<compile_context>
chip_gen: v5e
topology: v5e:2x2
jax: 0.10.0
libtpu: 0.0.40
codegen_flags: <defaults>
</compile_context>

<pallas_src>
import functools

import jax
import jax.numpy as jnp
import numpy as np
from jax.experimental import pallas as pl
from jax.experimental.pallas import tpu as pltpu

KK = 9  # 3x3 kernel taps


def _round_up(x, m):
    return (x + m - 1) // m * m


def _is_statically_zero(a):
    """True iff `a` is a concrete array that is exactly all-zero (or None)."""
    if a is None:
        return True
    try:
        return not bool(np.any(np.asarray(a)))
    except Exception:  # traced / abstract value -> cannot decide statically
        return False


def _vmem_limit_bytes():
    """Generation-aware VMEM limit (<=48 MiB on v7x, up to 96 MiB v5e/v6e)."""
    cap = 64 * 1024 * 1024
    try:
        info = pltpu.get_tpu_info()
        cap = int(getattr(info, "vmem_capacity_bytes", cap))
    except Exception:
        pass
    return int(min(max(cap * 3 // 4, 32 * 1024 * 1024), 96 * 1024 * 1024))


def _pick_l_tile(H, Wp, C, O, cd_bytes, y_bytes, vmem_limit, l_tile=None):
    """Pick the spatial (lane) tile size Lt, number of tiles T and halo Hp."""
    Hp = _round_up(2 * Wp + 2, 128)          # pool/conv halo rounded to lanes
    L_full = _round_up(H * Wp, 128)
    lt_min = max(2 * Hp, 128)                # halo must fit in one neighbour block
    cap = max(lt_min, min(L_full, 8192))
    if l_tile is None:
        # rough per-lane VMEM cost: 2 double-buffered xpf blocks + masks +
        # y out + scratches + live tap/acc temps
        per_lane = 24 * C + 2 * O * y_bytes + 9 * C * cd_bytes + 4 * O + 128
        l_tile = (vmem_limit // 2) // max(per_lane, 1)
    Lt = _round_up(int(min(max(int(l_tile), lt_min), cap)), 128)
    T = max(-(-(H * Wp) // Lt), 1)
    return Lt, T, Hp


# ----------------------------------------------------------------------------
# kernel 1: fused AvgPool2d(3,1,1) + DeformableConv2d(3x3, zero offsets)
#           + per-(image, tile) BatchNorm partial statistics
# ----------------------------------------------------------------------------
def _fused_kernel(xc_ref, xn_ref, pmc_ref, pmn_ref, om_ref, wreg_ref, *rest,
                  use_modulator, Wp, Lt, Hp, compute_dtype):
    if use_modulator:
        wmod_ref, bmod_ref, y_ref, sum_ref, sq_ref, x_sc, pool_sc = rest
    else:
        y_ref, sum_ref, sq_ref, x_sc, pool_sc = rest

    Lp = Lt + Hp            # pooled-map lanes held in pool_sc
    Lr = Lp + 2 * Wp        # row-sum lanes needed

    # ---- assemble the halo'd input window in VMEM (two aligned copies) ----
    x_sc[:, :Lt] = xc_ref[0]
    x_sc[:, Lt:] = xn_ref[0, :, :2 * Hp]

    # ---- separable 3x3 box sum (the 1/9 is folded into the conv weights) ----
    rs = x_sc[:, 0:Lr] + x_sc[:, 1:Lr + 1] + x_sc[:, 2:Lr + 2]            # (C, Lr)
    ps = rs[:, 0:Lp] + rs[:, Wp:Wp + Lp] + rs[:, 2 * Wp:2 * Wp + Lp]      # (C, Lp)
    # ring mask -> the conv sees a zero-padded pooled map
    pool_sc[:, :Lt] = ps[:, :Lt] * pmc_ref[...]
    pool_sc[:, Lt:] = ps[:, Lt:] * pmn_ref[0:1, 0:Hp]

    # ---- 9 conv taps as (C, Lt) slices of the pooled map (no im2col buffer) ----
    offs = [kh * Wp + kw for kh in range(3) for kw in range(3)]
    taps = [pool_sc[:, o:o + Lt].astype(compute_dtype) for o in offs]

    if use_modulator:
        # modulator conv by direct tap accumulation, then EUP sigmoid
        macc = jnp.dot(wmod_ref[0], taps[0], preferred_element_type=jnp.float32)
        for k in range(1, KK):
            macc = macc + jnp.dot(wmod_ref[k], taps[k],
                                  preferred_element_type=jnp.float32)
        m2 = 2.0 * jax.nn.sigmoid(macc + bmod_ref[...])                    # (KK, Lt)
        taps = [(taps[k] * m2[k:k + 1, :]).astype(compute_dtype)
                for k in range(KK)]
    # TODO(synk): bilinear sampling for learned nonzero offsets is not
    # implemented; the wrapper raises if offset_conv params are nonzero.

    # ---- (modulated) regular conv: 9 direct (O, C) x (C, Lt) MXU matmuls ----
    acc = jnp.dot(wreg_ref[0], taps[0], preferred_element_type=jnp.float32)
    for k in range(1, KK):
        acc = acc + jnp.dot(wreg_ref[k], taps[k],
                            preferred_element_type=jnp.float32)

    ym = acc * om_ref[...]   # zero the padded-width / padded-row garbage lanes
    y_ref[0] = ym.astype(y_ref.dtype)
    # per-(image, tile) BN partial stats (finalized on the host, exact in f32)
    sum_ref[0, 0] = jnp.sum(ym, axis=1, keepdims=True)
    sq_ref[0, 0] = jnp.sum(ym * ym, axis=1, keepdims=True)


def fused_pool_deform_conv(xpf, poolmask, outmask, wreg3, wmod3, bmod, *,
                           B, C, O, Wp, Lt, T, Hp, use_modulator,
                           compute_dtype, y_dtype, vmem_limit):
    kernel = functools.partial(_fused_kernel, use_modulator=use_modulator,
                               Wp=Wp, Lt=Lt, Hp=Hp, compute_dtype=compute_dtype)
    Lo = T * Lt
    in_specs = [
        pl.BlockSpec((1, C, Lt), lambda b, t: (b, 0, t)),        # current tile
        pl.BlockSpec((1, C, Lt), lambda b, t: (b, 0, t + 1)),    # halo (next) tile
        pl.BlockSpec((1, Lt), lambda b, t: (0, t)),              # poolmask cur
        pl.BlockSpec((1, Lt), lambda b, t: (0, t + 1)),          # poolmask halo
        pl.BlockSpec((1, Lt), lambda b, t: (0, t)),              # outmask
        pl.BlockSpec((KK, O, C), lambda b, t: (0, 0, 0)),        # conv weights
    ]
    inputs = [xpf, xpf, poolmask, poolmask, outmask, wreg3]
    if use_modulator:
        in_specs += [pl.BlockSpec((KK, KK, C), lambda b, t: (0, 0, 0)),
                     pl.BlockSpec((KK, 1), lambda b, t: (0, 0))]
        inputs += [wmod3, bmod]
    return pl.pallas_call(
        kernel,
        grid=(B, T),
        in_specs=in_specs,
        out_specs=(
            pl.BlockSpec((1, O, Lt), lambda b, t: (b, 0, t)),
            pl.BlockSpec((1, 1, O, 1), lambda b, t: (b, t, 0, 0)),
            pl.BlockSpec((1, 1, O, 1), lambda b, t: (b, t, 0, 0)),
        ),
        out_shape=(
            jax.ShapeDtypeStruct((B, O, Lo), y_dtype),
            jax.ShapeDtypeStruct((B, T, O, 1), jnp.float32),
            jax.ShapeDtypeStruct((B, T, O, 1), jnp.float32),
        ),
        scratch_shapes=[
            pltpu.VMEM((C, Lt + 2 * Hp), jnp.float32),   # halo'd input window
            pltpu.VMEM((C, Lt + Hp), jnp.float32),       # pooled map
        ],
        compiler_params=pltpu.CompilerParams(
            dimension_semantics=("parallel", "parallel"),
            vmem_limit_bytes=vmem_limit),
    )(*inputs)


# ----------------------------------------------------------------------------
# kernel 2: BatchNorm2d apply pass (scale/shift precomputed on the host)
# ----------------------------------------------------------------------------
def _bn_apply_kernel(y_ref, scale_ref, shift_ref, o_ref):
    o_ref[0] = y_ref[0].astype(jnp.float32) * scale_ref[...] + shift_ref[...]


def batchnorm_apply(y, scale, shift, *, Lt, T, vmem_limit):
    B, O, Lo = y.shape
    aliases = {0: 0} if y.dtype == jnp.float32 else {}
    return pl.pallas_call(
        _bn_apply_kernel,
        grid=(B, T),
        in_specs=[
            pl.BlockSpec((1, O, Lt), lambda b, t: (b, 0, t)),
            pl.BlockSpec((O, 1), lambda b, t: (0, 0)),
            pl.BlockSpec((O, 1), lambda b, t: (0, 0)),
        ],
        out_specs=pl.BlockSpec((1, O, Lt), lambda b, t: (b, 0, t)),
        out_shape=jax.ShapeDtypeStruct((B, O, Lo), jnp.float32),
        input_output_aliases=aliases,
        compiler_params=pltpu.CompilerParams(
            dimension_semantics=("parallel", "parallel"),
            vmem_limit_bytes=vmem_limit),
    )(y, scale, shift)


# ----------------------------------------------------------------------------
# full RadarConv forward (first_calculator='pool', stride=1)
# ----------------------------------------------------------------------------
def radar_conv_forward(x, params, stride=1, eps=1e-5,
                       compute_dtype=jnp.bfloat16, l_tile=None):
    if stride != 1:
        raise NotImplementedError("TODO(synk): stride > 1 not implemented")
    for k in ("w_off", "b_off"):
        if k in params and not _is_statically_zero(params[k]):
            raise NotImplementedError(
                "TODO(synk): bilinear sampling for learned nonzero offsets is "
                "not implemented (offset_conv is constant-zero in the module).")

    B, C, H, W = x.shape
    w_reg = params["w_reg"]
    O = w_reg.shape[0]
    cd = jnp.dtype(compute_dtype)
    y_dtype = jnp.float32 if cd == jnp.dtype(jnp.float32) else jnp.bfloat16

    Wp = W + 4                                   # width padded by 2 each side
    vmem_limit = _vmem_limit_bytes()
    Lt, T, Hp = _pick_l_tile(H, Wp, C, O,
                             cd_bytes=cd.itemsize,
                             y_bytes=jnp.dtype(y_dtype).itemsize,
                             vmem_limit=vmem_limit, l_tile=l_tile)

    # zero-pad by 2, flatten at padded width, pad flat length to (T+1)*Lt so
    # the "next block" halo fetch of the last tile reads zeros (glue only)
    xp = jnp.pad(x.astype(jnp.float32), ((0, 0), (0, 0), (2, 2), (2, 2)))
    xpf = xp.reshape(B, C, (H + 4) * Wp)
    Lx = (T + 1) * Lt
    xpf = jnp.pad(xpf, ((0, 0), (0, 0), (0, Lx - (H + 4) * Wp)))

    # host-built constant masks (pooled zero-ring / valid output lanes)
    g = np.arange(Lx)
    gi, gj = g // Wp, g % Wp
    poolmask = jnp.asarray(
        ((gi >= 1) & (gi <= H) & (gj >= 1) & (gj <= W)).astype(np.float32)
    ).reshape(1, Lx)
    q = np.arange(T * Lt)
    qi, qj = q // Wp, q % Wp
    outmask = jnp.asarray(
        ((qi < H) & (qj < W)).astype(np.float32)).reshape(1, T * Lt)

    # fold the AvgPool 1/9 into the conv weights; layout [tap k][out][chan]
    wreg3 = (jnp.transpose(w_reg, (2, 3, 0, 1)).reshape(KK, O, C) / 9.0).astype(cd)
    use_modulator = not (_is_statically_zero(params.get("w_mod")) and
                         _is_statically_zero(params.get("b_mod")))
    if use_modulator:
        wmod3 = (jnp.transpose(params["w_mod"], (2, 3, 0, 1))
                 .reshape(KK, KK, C) / 9.0).astype(cd)
        bmod = params["b_mod"].reshape(KK, 1).astype(jnp.float32)
    else:
        wmod3, bmod = None, None

    y, sums, sqs = fused_pool_deform_conv(
        xpf, poolmask, outmask, wreg3, wmod3, bmod,
        B=B, C=C, O=O, Wp=Wp, Lt=Lt, T=T, Hp=Hp,
        use_modulator=use_modulator, compute_dtype=cd, y_dtype=y_dtype,
        vmem_limit=vmem_limit)

    # BatchNorm2d training-mode batch stats (tiny reduction in plain JAX).
    # TODO(synk): running_mean / running_var are not tracked/updated.
    n = float(B * H * W)
    s = jnp.sum(sums, axis=(0, 1))               # (O, 1)
    ss = jnp.sum(sqs, axis=(0, 1))               # (O, 1)
    mean = s / n
    var = ss / n - mean * mean                   # biased variance
    inv = jax.lax.rsqrt(var + eps)
    scale = (params["gamma"].reshape(O, 1) * inv).astype(jnp.float32)
    shift = (params["beta"].reshape(O, 1) - mean * scale).astype(jnp.float32)

    yn = batchnorm_apply(y, scale, shift, Lt=Lt, T=T, vmem_limit=vmem_limit)

    # crop padded-width lanes back to (B, O, H, W) (glue: reshape / slice only)
    return yn[:, :, :H * Wp].reshape(B, O, H, Wp)[:, :, :, :W]


# ----------------------------------------------------------------------------
# pure-JAX reference for verification
# ----------------------------------------------------------------------------
def radar_conv_reference(x, params):
    w_reg, w_mod, b_mod = params["w_reg"], params["w_mod"], params["b_mod"]
    gamma, beta = params["gamma"], params["beta"]
    B, C, H, W = x.shape
    O = w_reg.shape[0]
    xp = jnp.pad(x, ((0, 0), (0, 0), (1, 1), (1, 1)))
    pooled = sum(xp[:, :, kh:kh + H, kw:kw + W]
                 for kh in range(3) for kw in range(3)) / 9.0
    pp = jnp.pad(pooled, ((0, 0), (0, 0), (1, 1), (1, 1)))
    taps = jnp.stack([pp[:, :, kh:kh + H, kw:kw + W]
                      for kh in range(3) for kw in range(3)], axis=1)
    mod = jnp.einsum("mck,bkchw->bmhw", w_mod.reshape(KK, C, KK), taps,
                     precision=jax.lax.Precision.HIGHEST) \
        + b_mod[None, :, None, None]
    mask = 2.0 * jax.nn.sigmoid(mod)
    y = jnp.einsum("ock,bkchw,bkhw->bohw", w_reg.reshape(O, C, KK), taps, mask,
                   precision=jax.lax.Precision.HIGHEST)
    mean = jnp.mean(y, axis=(0, 2, 3), keepdims=True)
    var = jnp.mean((y - mean) ** 2, axis=(0, 2, 3), keepdims=True)
    return (y - mean) * jax.lax.rsqrt(var + 1e-5) * gamma[None, :, None, None] \
        + beta[None, :, None, None]


if __name__ == "__main__":
    key = jax.random.PRNGKey(0)
    B, C, H, W, O = 2, 4, 16, 16, 8
    kx, kw, km, kb = jax.random.split(key, 4)
    x = jax.random.normal(kx, (B, C, H, W), dtype=jnp.float32)

    params = {
        # regular_conv weight (bias=False in the module)
        "w_reg": 0.1 * jax.random.normal(kw, (O, C, 3, 3), dtype=jnp.float32),
        # modulator_conv / offset_conv: nn.init.constant_(..., 0.0)
        "w_mod": jnp.zeros((KK, C, 3, 3), jnp.float32),
        "b_mod": jnp.zeros((KK,), jnp.float32),
        "w_off": jnp.zeros((2 * KK, C, 3, 3), jnp.float32),
        "b_off": jnp.zeros((2 * KK,), jnp.float32),
        # BatchNorm2d affine params (default init)
        "gamma": jnp.ones((O,), jnp.float32),
        "beta": jnp.zeros((O,), jnp.float32),
    }

    # 1) shipped config: zero-init modulator -> trace-time fast path; f32 math,
    #    single L-tile, BN applied in place (alias path)
    out = jax.block_until_ready(
        radar_conv_forward(x, params, compute_dtype=jnp.float32))
    assert out.shape == (B, O, H, W)
    ref = radar_conv_reference(x, params)
    np.testing.assert_allclose(np.asarray(out), np.asarray(ref),
                               rtol=2e-3, atol=2e-3)

    # 2) generic modulator path + forced multi-tile grid (exercises the halo)
    params_m = dict(params)
    params_m["w_mod"] = 0.1 * jax.random.normal(km, (KK, C, 3, 3), jnp.float32)
    params_m["b_mod"] = 0.1 * jax.random.normal(kb, (KK,), jnp.float32)
    out_m = jax.block_until_ready(
        radar_conv_forward(x, params_m, compute_dtype=jnp.float32, l_tile=256))
    ref_m = radar_conv_reference(x, params_m)
    np.testing.assert_allclose(np.asarray(out_m), np.asarray(ref_m),
                               rtol=2e-3, atol=2e-3)

    # 3) default config: bf16 MXU operands + bf16 intermediate (all gens)
    out_bf = jax.block_until_ready(radar_conv_forward(x, params_m))
    np.testing.assert_allclose(np.asarray(out_bf), np.asarray(ref_m),
                               rtol=5e-2, atol=5e-2)

    print("KERNEL_OK")
</pallas_src>

<mosaic_0001>
module attributes {stable_mosaic.version = 11 : i64} {
  func.func @_fused_kernel(%arg0: i32, %arg1: i32, %arg2: memref<1x4x384xf32, #tpu.memory_space<vmem>>, %arg3: memref<1x4x384xf32, #tpu.memory_space<vmem>>, %arg4: memref<1x384xf32, #tpu.memory_space<vmem>>, %arg5: memref<1x384xf32, #tpu.memory_space<vmem>>, %arg6: memref<1x384xf32, #tpu.memory_space<vmem>>, %arg7: memref<9x8x4xf32, #tpu.memory_space<vmem>>, %arg8: memref<1x8x384xf32, #tpu.memory_space<vmem>>, %arg9: memref<1x1x8x1xf32, #tpu.memory_space<vmem>>, %arg10: memref<1x1x8x1xf32, #tpu.memory_space<vmem>>, %arg11: memref<4x640xf32, #tpu.memory_space<vmem>>, %arg12: memref<4x512xf32, #tpu.memory_space<vmem>>) attributes {dimension_semantics = [#tpu.dimension_semantics<parallel>, #tpu.dimension_semantics<parallel>], iteration_bounds = array<i64: 2, 1>, scalar_prefetch = 0 : i64, scratch_operands = 2 : i64, tpu.core_type = #tpu.core_type<tc>, window_params = [{transform_indices = @transform_0, window_bounds = array<i64: 1, 4, 384>}, {transform_indices = @transform_1, window_bounds = array<i64: 1, 4, 384>}, {transform_indices = @transform_2, window_bounds = array<i64: 1, 384>}, {transform_indices = @transform_3, window_bounds = array<i64: 1, 384>}, {transform_indices = @transform_4, window_bounds = array<i64: 1, 384>}, {pipeline_mode = #tpu.pipeline_mode<synchronous>, transform_indices = @transform_5, window_bounds = array<i64: 9, 8, 4>}, {transform_indices = @transform_6, window_bounds = array<i64: 1, 8, 384>}, {transform_indices = @transform_7, window_bounds = array<i64: 1, 1, 8, 1>}, {transform_indices = @transform_8, window_bounds = array<i64: 1, 1, 8, 1>}]} {
    %c0 = arith.constant 0 : index
    %c0_0 = arith.constant 0 : index
    %c0_1 = arith.constant 0 : index
    %0 = vector.load %arg2[%c0, %c0_0, %c0_1] : memref<1x4x384xf32, #tpu.memory_space<vmem>>, vector<1x4x384xf32>
    %1 = vector.shape_cast %0 : vector<1x4x384xf32> to vector<4x384xf32>
    %c0_2 = arith.constant 0 : index
    %c0_3 = arith.constant 0 : index
    %2 = vector.load %arg11[%c0_2, %c0_3] : memref<4x640xf32, #tpu.memory_space<vmem>>, vector<4x384xf32>
    tpu.vector_store %arg11[%c0_2, %c0_3], %1 {strides = array<i32>} : memref<4x640xf32, #tpu.memory_space<vmem>>, vector<4x384xf32>,
    %c0_4 = arith.constant 0 : index
    %c0_5 = arith.constant 0 : index
    %c0_6 = arith.constant 0 : index
    %3 = vector.load %arg3[%c0_4, %c0_5, %c0_6] : memref<1x4x384xf32, #tpu.memory_space<vmem>>, vector<1x4x256xf32>
    %4 = vector.shape_cast %3 : vector<1x4x256xf32> to vector<4x256xf32>
    %c0_7 = arith.constant 0 : index
    %c384 = arith.constant 384 : index
    %5 = vector.load %arg11[%c0_7, %c384] : memref<4x640xf32, #tpu.memory_space<vmem>>, vector<4x256xf32>
    tpu.vector_store %arg11[%c0_7, %c384], %4 {strides = array<i32>} : memref<4x640xf32, #tpu.memory_space<vmem>>, vector<4x256xf32>,
    %c0_8 = arith.constant 0 : index
    %c0_9 = arith.constant 0 : index
    %6 = vector.load %arg11[%c0_8, %c0_9] : memref<4x640xf32, #tpu.memory_space<vmem>>, vector<4x552xf32>
    %c0_10 = arith.constant 0 : index
    %c1 = arith.constant 1 : index
    %7 = vector.load %arg11[%c0_10, %c1] : memref<4x640xf32, #tpu.memory_space<vmem>>, vector<4x552xf32>
    %8 = arith.addf %6, %7 : vector<4x552xf32>
    %c0_11 = arith.constant 0 : index
    %c2 = arith.constant 2 : index
    %9 = vector.load %arg11[%c0_11, %c2] : memref<4x640xf32, #tpu.memory_space<vmem>>, vector<4x552xf32>
    %10 = arith.addf %8, %9 : vector<4x552xf32>
    %11 = vector.extract_strided_slice %10 {offsets = [0, 0], sizes = [4, 512], strides = [1, 1]} : vector<4x552xf32> to vector<4x512xf32>
    %12 = vector.extract_strided_slice %10 {offsets = [0, 20], sizes = [4, 512], strides = [1, 1]} : vector<4x552xf32> to vector<4x512xf32>
    %13 = arith.addf %11, %12 : vector<4x512xf32>
    %14 = vector.extract_strided_slice %10 {offsets = [0, 40], sizes = [4, 512], strides = [1, 1]} : vector<4x552xf32> to vector<4x512xf32>
    %15 = arith.addf %13, %14 : vector<4x512xf32>
    %16 = vector.extract_strided_slice %15 {offsets = [0, 0], sizes = [4, 384], strides = [1, 1]} : vector<4x512xf32> to vector<4x384xf32>
    %c0_12 = arith.constant 0 : index
    %c0_13 = arith.constant 0 : index
    %17 = vector.load %arg4[%c0_12, %c0_13] : memref<1x384xf32, #tpu.memory_space<vmem>>, vector<1x384xf32>
    %18 = vector.broadcast %17 : vector<1x384xf32> to vector<4x384xf32>
    %19 = arith.mulf %16, %18 : vector<4x384xf32>
    %c0_14 = arith.constant 0 : index
    %c0_15 = arith.constant 0 : index
    %20 = vector.load %arg12[%c0_14, %c0_15] : memref<4x512xf32, #tpu.memory_space<vmem>>, vector<4x384xf32>
    tpu.vector_store %arg12[%c0_14, %c0_15], %19 {strides = array<i32>} : memref<4x512xf32, #tpu.memory_space<vmem>>, vector<4x384xf32>,
    %21 = vector.extract_strided_slice %15 {offsets = [0, 384], sizes = [4, 128], strides = [1, 1]} : vector<4x512xf32> to vector<4x128xf32>
    %c0_16 = arith.constant 0 : index
    %c0_17 = arith.constant 0 : index
    %22 = vector.load %arg5[%c0_16, %c0_17] : memref<1x384xf32, #tpu.memory_space<vmem>>, vector<1x128xf32>
    %23 = vector.broadcast %22 : vector<1x128xf32> to vector<4x128xf32>
    %24 = arith.mulf %21, %23 : vector<4x128xf32>
    %c0_18 = arith.constant 0 : index
    %c384_19 = arith.constant 384 : index
    %25 = vector.load %arg12[%c0_18, %c384_19] : memref<4x512xf32, #tpu.memory_space<vmem>>, vector<4x128xf32>
    tpu.vector_store %arg12[%c0_18, %c384_19], %24 {strides = array<i32>} : memref<4x512xf32, #tpu.memory_space<vmem>>, vector<4x128xf32>,
    %c0_20 = arith.constant 0 : index
    %c0_21 = arith.constant 0 : index
    %26 = vector.load %arg12[%c0_20, %c0_21] : memref<4x512xf32, #tpu.memory_space<vmem>>, vector<4x384xf32>
    %c0_22 = arith.constant 0 : index
    %c1_23 = arith.constant 1 : index
    %27 = vector.load %arg12[%c0_22, %c1_23] : memref<4x512xf32, #tpu.memory_space<vmem>>, vector<4x384xf32>
    %c0_24 = arith.constant 0 : index
    %c2_25 = arith.constant 2 : index
    %28 = vector.load %arg12[%c0_24, %c2_25] : memref<4x512xf32, #tpu.memory_space<vmem>>, vector<4x384xf32>
    %c0_26 = arith.constant 0 : index
    %c20 = arith.constant 20 : index
    %29 = vector.load %arg12[%c0_26, %c20] : memref<4x512xf32, #tpu.memory_space<vmem>>, vector<4x384xf32>
    %c0_27 = arith.constant 0 : index
    %c21 = arith.constant 21 : index
    %30 = vector.load %arg12[%c0_27, %c21] : memref<4x512xf32, #tpu.memory_space<vmem>>, vector<4x384xf32>
    %c0_28 = arith.constant 0 : index
    %c22 = arith.constant 22 : index
    %31 = vector.load %arg12[%c0_28, %c22] : memref<4x512xf32, #tpu.memory_space<vmem>>, vector<4x384xf32>
    %c0_29 = arith.constant 0 : index
    %c40 = arith.constant 40 : index
    %32 = vector.load %arg12[%c0_29, %c40] : memref<4x512xf32, #tpu.memory_space<vmem>>, vector<4x384xf32>
    %c0_30 = arith.constant 0 : index
    %c41 = arith.constant 41 : index
    %33 = vector.load %arg12[%c0_30, %c41] : memref<4x512xf32, #tpu.memory_space<vmem>>, vector<4x384xf32>
    %c0_31 = arith.constant 0 : index
    %c42 = arith.constant 42 : index
    %34 = vector.load %arg12[%c0_31, %c42] : memref<4x512xf32, #tpu.memory_space<vmem>>, vector<4x384xf32>
    %c0_32 = arith.constant 0 : index
    %c0_33 = arith.constant 0 : index
    %c0_34 = arith.constant 0 : index
    %35 = vector.load %arg7[%c0_32, %c0_33, %c0_34] : memref<9x8x4xf32, #tpu.memory_space<vmem>>, vector<1x8x4xf32>
    %36 = vector.shape_cast %35 : vector<1x8x4xf32> to vector<8x4xf32>
    %cst = arith.constant dense<0.000000e+00> : vector<8x384xf32>
    %37 = tpu.matmul %36, %26, %cst {dimension_numbers = #tpu.dot_dimension_numbers<[1], [0], [0], [1], [0, 0, 1, 1], [], []>} : vector<8x4xf32>, vector<4x384xf32>, vector<8x384xf32> -> vector<8x384xf32>
    %c1_35 = arith.constant 1 : index
    %c0_36 = arith.constant 0 : index
    %c0_37 = arith.constant 0 : index
    %38 = vector.load %arg7[%c1_35, %c0_36, %c0_37] : memref<9x8x4xf32, #tpu.memory_space<vmem>>, vector<1x8x4xf32>
    %39 = vector.shape_cast %38 : vector<1x8x4xf32> to vector<8x4xf32>
    %cst_38 = arith.constant dense<0.000000e+00> : vector<8x384xf32>
    %40 = tpu.matmul %39, %27, %cst_38 {dimension_numbers = #tpu.dot_dimension_numbers<[1], [0], [0], [1], [0, 0, 1, 1], [], []>} : vector<8x4xf32>, vector<4x384xf32>, vector<8x384xf32> -> vector<8x384xf32>
    %41 = arith.addf %37, %40 : vector<8x384xf32>
    %c2_39 = arith.constant 2 : index
    %c0_40 = arith.constant 0 : index
    %c0_41 = arith.constant 0 : index
    %42 = vector.load %arg7[%c2_39, %c0_40, %c0_41] : memref<9x8x4xf32, #tpu.memory_space<vmem>>, vector<1x8x4xf32>
    %43 = vector.shape_cast %42 : vector<1x8x4xf32> to vector<8x4xf32>
    %cst_42 = arith.constant dense<0.000000e+00> : vector<8x384xf32>
    %44 = tpu.matmul %43, %28, %cst_42 {dimension_numbers = #tpu.dot_dimension_numbers<[1], [0], [0], [1], [0, 0, 1, 1], [], []>} : vector<8x4xf32>, vector<4x384xf32>, vector<8x384xf32> -> vector<8x384xf32>
    %45 = arith.addf %41, %44 : vector<8x384xf32>
    %c3 = arith.constant 3 : index
    %c0_43 = arith.constant 0 : index
    %c0_44 = arith.constant 0 : index
    %46 = vector.load %arg7[%c3, %c0_43, %c0_44] : memref<9x8x4xf32, #tpu.memory_space<vmem>>, vector<1x8x4xf32>
    %47 = vector.shape_cast %46 : vector<1x8x4xf32> to vector<8x4xf32>
    %cst_45 = arith.constant dense<0.000000e+00> : vector<8x384xf32>
    %48 = tpu.matmul %47, %29, %cst_45 {dimension_numbers = #tpu.dot_dimension_numbers<[1], [0], [0], [1], [0, 0, 1, 1], [], []>} : vector<8x4xf32>, vector<4x384xf32>, vector<8x384xf32> -> vector<8x384xf32>
    %49 = arith.addf %45, %48 : vector<8x384xf32>
    %c4 = arith.constant 4 : index
    %c0_46 = arith.constant 0 : index
    %c0_47 = arith.constant 0 : index
    %50 = vector.load %arg7[%c4, %c0_46, %c0_47] : memref<9x8x4xf32, #tpu.memory_space<vmem>>, vector<1x8x4xf32>
    %51 = vector.shape_cast %50 : vector<1x8x4xf32> to vector<8x4xf32>
    %cst_48 = arith.constant dense<0.000000e+00> : vector<8x384xf32>
    %52 = tpu.matmul %51, %30, %cst_48 {dimension_numbers = #tpu.dot_dimension_numbers<[1], [0], [0], [1], [0, 0, 1, 1], [], []>} : vector<8x4xf32>, vector<4x384xf32>, vector<8x384xf32> -> vector<8x384xf32>
    %53 = arith.addf %49, %52 : vector<8x384xf32>
    %c5 = arith.constant 5 : index
    %c0_49 = arith.constant 0 : index
    %c0_50 = arith.constant 0 : index
    %54 = vector.load %arg7[%c5, %c0_49, %c0_50] : memref<9x8x4xf32, #tpu.memory_space<vmem>>, vector<1x8x4xf32>
    %55 = vector.shape_cast %54 : vector<1x8x4xf32> to vector<8x4xf32>
    %cst_51 = arith.constant dense<0.000000e+00> : vector<8x384xf32>
    %56 = tpu.matmul %55, %31, %cst_51 {dimension_numbers = #tpu.dot_dimension_numbers<[1], [0], [0], [1], [0, 0, 1, 1], [], []>} : vector<8x4xf32>, vector<4x384xf32>, vector<8x384xf32> -> vector<8x384xf32>
    %57 = arith.addf %53, %56 : vector<8x384xf32>
    %c6 = arith.constant 6 : index
    %c0_52 = arith.constant 0 : index
    %c0_53 = arith.constant 0 : index
    %58 = vector.load %arg7[%c6, %c0_52, %c0_53] : memref<9x8x4xf32, #tpu.memory_space<vmem>>, vector<1x8x4xf32>
    %59 = vector.shape_cast %58 : vector<1x8x4xf32> to vector<8x4xf32>
    %cst_54 = arith.constant dense<0.000000e+00> : vector<8x384xf32>
    %60 = tpu.matmul %59, %32, %cst_54 {dimension_numbers = #tpu.dot_dimension_numbers<[1], [0], [0], [1], [0, 0, 1, 1], [], []>} : vector<8x4xf32>, vector<4x384xf32>, vector<8x384xf32> -> vector<8x384xf32>
    %61 = arith.addf %57, %60 : vector<8x384xf32>
    %c7 = arith.constant 7 : index
    %c0_55 = arith.constant 0 : index
    %c0_56 = arith.constant 0 : index
    %62 = vector.load %arg7[%c7, %c0_55, %c0_56] : memref<9x8x4xf32, #tpu.memory_space<vmem>>, vector<1x8x4xf32>
    %63 = vector.shape_cast %62 : vector<1x8x4xf32> to vector<8x4xf32>
    %cst_57 = arith.constant dense<0.000000e+00> : vector<8x384xf32>
    %64 = tpu.matmul %63, %33, %cst_57 {dimension_numbers = #tpu.dot_dimension_numbers<[1], [0], [0], [1], [0, 0, 1, 1], [], []>} : vector<8x4xf32>, vector<4x384xf32>, vector<8x384xf32> -> vector<8x384xf32>
    %65 = arith.addf %61, %64 : vector<8x384xf32>
    %c8 = arith.constant 8 : index
    %c0_58 = arith.constant 0 : index
    %c0_59 = arith.constant 0 : index
    %66 = vector.load %arg7[%c8, %c0_58, %c0_59] : memref<9x8x4xf32, #tpu.memory_space<vmem>>, vector<1x8x4xf32>
    %67 = vector.shape_cast %66 : vector<1x8x4xf32> to vector<8x4xf32>
    %cst_60 = arith.constant dense<0.000000e+00> : vector<8x384xf32>
    %68 = tpu.matmul %67, %34, %cst_60 {dimension_numbers = #tpu.dot_dimension_numbers<[1], [0], [0], [1], [0, 0, 1, 1], [], []>} : vector<8x4xf32>, vector<4x384xf32>, vector<8x384xf32> -> vector<8x384xf32>
    %69 = arith.addf %65, %68 : vector<8x384xf32>
    %c0_61 = arith.constant 0 : index
    %c0_62 = arith.constant 0 : index
    %70 = vector.load %arg6[%c0_61, %c0_62] : memref<1x384xf32, #tpu.memory_space<vmem>>, vector<1x384xf32>
    %71 = vector.broadcast %70 : vector<1x384xf32> to vector<8x384xf32>
    %72 = arith.mulf %69, %71 : vector<8x384xf32>
    %c0_63 = arith.constant 0 : index
    %c0_64 = arith.constant 0 : index
    %c0_65 = arith.constant 0 : index
    %73 = vector.load %arg8[%c0_63, %c0_64, %c0_65] : memref<1x8x384xf32, #tpu.memory_space<vmem>>, vector<1x8x384xf32>
    %74 = vector.shape_cast %73 : vector<1x8x384xf32> to vector<8x384xf32>
    %75 = vector.shape_cast %72 : vector<8x384xf32> to vector<1x8x384xf32>
    tpu.vector_store %arg8[%c0_63, %c0_64, %c0_65], %75 {strides = array<i32>} : memref<1x8x384xf32, #tpu.memory_space<vmem>>, vector<1x8x384xf32>,
    %cst_66 = arith.constant dense<0.000000e+00> : vector<8xf32>
    %76 = vector.multi_reduction <add>, %72, %cst_66 [1] : vector<8x384xf32> to vector<8xf32>
    %77 = vector.shape_cast %76 : vector<8xf32> to vector<8x1xf32>
    %c0_67 = arith.constant 0 : index
    %c0_68 = arith.constant 0 : index
    %c0_69 = arith.constant 0 : index
    %c0_70 = arith.constant 0 : index
    %78 = vector.load %arg9[%c0_67, %c0_68, %c0_69, %c0_70] : memref<1x1x8x1xf32, #tpu.memory_space<vmem>>, vector<1x1x8x1xf32>
    %79 = vector.shape_cast %78 : vector<1x1x8x1xf32> to vector<8x1xf32>
    %80 = vector.shape_cast %77 : vector<8x1xf32> to vector<1x1x8x1xf32>
    tpu.vector_store %arg9[%c0_67, %c0_68, %c0_69, %c0_70], %80 {strides = array<i32>} : memref<1x1x8x1xf32, #tpu.memory_space<vmem>>, vector<1x1x8x1xf32>,
    %81 = arith.mulf %72, %72 : vector<8x384xf32>
    %cst_71 = arith.constant dense<0.000000e+00> : vector<8xf32>
    %82 = vector.multi_reduction <add>, %81, %cst_71 [1] : vector<8x384xf32> to vector<8xf32>
    %83 = vector.shape_cast %82 : vector<8xf32> to vector<8x1xf32>
    %c0_72 = arith.constant 0 : index
    %c0_73 = arith.constant 0 : index
    %c0_74 = arith.constant 0 : index
    %c0_75 = arith.constant 0 : index
    %84 = vector.load %arg10[%c0_72, %c0_73, %c0_74, %c0_75] : memref<1x1x8x1xf32, #tpu.memory_space<vmem>>, vector<1x1x8x1xf32>
    %85 = vector.shape_cast %84 : vector<1x1x8x1xf32> to vector<8x1xf32>
    %86 = vector.shape_cast %83 : vector<8x1xf32> to vector<1x1x8x1xf32>
    tpu.vector_store %arg10[%c0_72, %c0_73, %c0_74, %c0_75], %86 {strides = array<i32>} : memref<1x1x8x1xf32, #tpu.memory_space<vmem>>, vector<1x1x8x1xf32>,
    return
  }
  func.func @transform_0(%arg0: i32, %arg1: i32) -> (i32, i32, i32) {
    %c0_i32 = arith.constant 0 : i32
    %c0_i32_0 = arith.constant 0 : i32
    return %arg0, %c0_i32, %arg1 : i32, i32, i32
  }
  func.func @transform_1(%arg0: i32, %arg1: i32) -> (i32, i32, i32) {
    %c1_i32 = arith.constant 1 : i32
    %0 = arith.addi %arg1, %c1_i32 : i32
    %c0_i32 = arith.constant 0 : i32
    %c0_i32_0 = arith.constant 0 : i32
    return %arg0, %c0_i32, %0 : i32, i32, i32
  }
  func.func @transform_2(%arg0: i32, %arg1: i32) -> (i32, i32) {
    %c0_i32 = arith.constant 0 : i32
    %c0_i32_0 = arith.constant 0 : i32
    return %c0_i32, %arg1 : i32, i32
  }
  func.func @transform_3(%arg0: i32, %arg1: i32) -> (i32, i32) {
    %c1_i32 = arith.constant 1 : i32
    %0 = arith.addi %arg1, %c1_i32 : i32
    %c0_i32 = arith.constant 0 : i32
    %c0_i32_0 = arith.constant 0 : i32
    return %c0_i32, %0 : i32, i32
  }
  func.func @transform_4(%arg0: i32, %arg1: i32) -> (i32, i32) {
    %c0_i32 = arith.constant 0 : i32
    %c0_i32_0 = arith.constant 0 : i32
    return %c0_i32, %arg1 : i32, i32
  }
  func.func @transform_5(%arg0: i32, %arg1: i32) -> (i32, i32, i32) {
    %c0_i32 = arith.constant 0 : i32
    %c0_i32_0 = arith.constant 0 : i32
    %c0_i32_1 = arith.constant 0 : i32
    %c0_i32_2 = arith.constant 0 : i32
    return %c0_i32, %c0_i32_0, %c0_i32_1 : i32, i32, i32
  }
  func.func @transform_6(%arg0: i32, %arg1: i32) -> (i32, i32, i32) {
    %c0_i32 = arith.constant 0 : i32
    %c0_i32_0 = arith.constant 0 : i32
    return %arg0, %c0_i32, %arg1 : i32, i32, i32
  }
  func.func @transform_7(%arg0: i32, %arg1: i32) -> (i32, i32, i32, i32) {
    %c0_i32 = arith.constant 0 : i32
    %c0_i32_0 = arith.constant 0 : i32
    %c0_i32_1 = arith.constant 0 : i32
    return %arg0, %arg1, %c0_i32, %c0_i32_0 : i32, i32, i32, i32
  }
  func.func @transform_8(%arg0: i32, %arg1: i32) -> (i32, i32, i32, i32) {
    %c0_i32 = arith.constant 0 : i32
    %c0_i32_0 = arith.constant 0 : i32
    %c0_i32_1 = arith.constant 0 : i32
    return %arg0, %arg1, %c0_i32, %c0_i32_0 : i32, i32, i32, i32
  }
}

</mosaic_0001>

<llo_original>
// kernel: tpu_custom_call.1
$region0: #{tpu_custom_call.1}
  #allocation0 [shape = 'u32[]', space=smem, size = 0x4, offset = 0x4, fixed_abs, tag = 'smem constant byte address 0x4 - core index']
  #allocation1 [shape = 'u32[72,128]{1,0:T(1,128)}', space=vmem, size = 0x9000, scoped, tag = 'internal scratch']
  #allocation2 [shape = 'f32[4,640]{1,0:T(4,128)}', space=vmem, size = 0x2800, scoped, tag = 'scratch operand']
  #allocation3 [shape = 'f32[4,512]{1,0:T(4,128)}', space=vmem, size = 0x2000, scoped, tag = 'scratch operand']
  %s0 = inlined_call_operand.vmem [shape: f32[2,4,768], index: 0, kind: input, shape index: {}]
  %s1 = inlined_call_operand.vmem [shape: f32[2,4,768], index: 1, kind: input, shape index: {}]
  %s2 = inlined_call_operand.vmem [shape: f32[1,768], index: 2, kind: input, shape index: {}]
  %s3 = inlined_call_operand.hbm [shape: f32[1,768], index: 3, kind: input, shape index: {}]
  %s4 = inlined_call_operand.vmem [shape: f32[1,384], index: 4, kind: input, shape index: {}]
  %s5 = inlined_call_operand.vmem [shape: f32[9,8,4], index: 5, kind: input, shape index: {}]
  %s6 = inlined_call_operand.hbm [shape: f32[2,8,384], index: 6, kind: output, shape index: {0}]
  %s7 = inlined_call_operand.vmem [shape: f32[2,1,8,1], index: 7, kind: output, shape index: {1}]
  %s8 = inlined_call_operand.vmem [shape: f32[2,1,8,1], index: 8, kind: output, shape index: {2}]
  %9 = xla_tuple %s6, %s7, %s8
  %s10 = sld [smem:[#allocation0]]
  $region77: #{tpu_custom_call.1} parent=0
    _
  %s12 = ssub.s32 1, %s10
  %s13 = scalar_select 0, %s12, %s10
  $region1: #{tpu_custom_call.1} parent=0
    #allocation4 [shape = 'u8[1536]{0}', space=vmem, size = 0x800, scoped, tag = 'input window, operand 3, single buffered']
    #allocation5 [shape = 's32[2]{0}', space=sflag, size = 0x8, scoped, tag = 'scoped memory for tpu_custom_call.1']
    #allocation6 [shape = 's32[2]{0}', space=sflag, size = 0x8, scoped, tag = 'scoped memory for tpu_custom_call.1']
    #allocation7 [shape = 'u8[24576]{0}', space=vmem, size = 0x6000, scoped, tag = 'output window, operand 0']
    %14 = vsyncpa [#allocation5], 0
    %15 = vsyncpa [#allocation6], 0
    %s16 = scalar_lea.sflag [#allocation6], 1
    %17 = vsyncpa %s16, 0
    loop: start=0, step=1, limit=4
    $region2: #{tpu_custom_call.1} parent=1 // loop_pre_header
      _
    $region3: #{tpu_custom_call.1} parent=1 // loop_header
      %s19 = sphi 0, %s23
      %p20 = scmp.ge.s32.totalorder %s19, 4
      %s26 = sphi 0, %s38
      %s27 = sphi 0, %s34
      %s28 = sphi 0, %s26
      %s29 = sphi 0, %s27
      %s30 = sphi 0, %s28
      %s31 = sphi 0, %s29
      %s43 = sphi 0, %s45
      %s46 = sphi 0, %s43
      %s47 = sphi 0, %s46
      %s63 = sphi 0, %s47
      %s73 = sphi 0, %s75
      %s76 = sphi 0, %s73
      %s77 = sphi 0, %s76
      %s93 = sphi 0, %s77
      %s99 = sphi 0, %s101
      %s102 = sphi 0, %s99
      %s103 = sphi 0, %s102
      %s119 = sphi 0, %s103
      %s127 = sphi 0, %s129
      %s130 = sphi 0, %s127
      %s131 = sphi 0, %s130
      %s147 = sphi 0, %s131
      %s153 = sphi 0, %s155
      %s156 = sphi 0, %s153
      %s157 = sphi 0, %s156
      %s173 = sphi 0, %s157
      %s177 = sphi 0, %s177
      %s179 = sphi 0, %s177
      %s180 = sphi 0, %s179
      %s194 = sphi 0, %s180
      %s202 = sphi 0, %s204
      %s205 = sphi 0, %s202
      %s206 = sphi 0, %s205
      %s222 = sphi 0, %s206
      %s230 = sphi 0, %s232
      %s233 = sphi 0, %s230
      %s234 = sphi 0, %s233
      %s250 = sphi 0, %s234
      %s258 = sphi 0, %s260
      %s261 = sphi 0, %s258
      %s262 = sphi 0, %s261
      %s278 = sphi 0, %s262
    $region4: #{tpu_custom_call.1} parent=1 // loop_header_branch
      %22 = sbr.rel (%p20) target = $region8
    $region5: #{tpu_custom_call.1} parent=1 // loop_body
      %s24 = ssub.s32 %s19, 1
      %s25 = ssub.s32 %s19, 2
      %s32 = sadd.s32 1, %s27
      %p33 = scmp.ge.s32.totalorder %s32, 1
      %s34 = scalar_select %p33, 0, %s32
      %s35 = sadd.s32 1, %s26
      %s36 = scalar_select %p33, %s35, %s26
      %p37 = scmp.ge.s32.totalorder %s36, 2
      %s38 = scalar_select %p37, 0, %s36
      %s39 = ssub.s32 %s26, %s38
      %s40 = ssub.s32 %s27, %s34
      %s41 = sor.u32 %s39, %s40
      %p42 = scmp.eq.s32.totalorder %s41, 0
      %s44 = sadd.s32 %s43, 1
      %s45 = scalar_select %p42, %s43, %s44
      %p48 = pneg %p42
      %p49 = scmp.eq.s32.totalorder %s19, 1
      %p50 = por %p48, %p49
      %p51 = scmp.ne.s32.totalorder %s43, %s46
      %p52 = scmp.eq.s32.totalorder %s19, 0
      %p53 = por %p51, %p52
      %p54 = scmp.ne.s32.totalorder %s43, %s46
      %p55 = scmp.eq.s32.totalorder %s24, 1
      %p56 = por %p54, %p55
      %p57 = scmp.ne.s32.totalorder %s46, %s47
      %p58 = scmp.eq.s32.totalorder %s24, 0
      %p59 = por %p57, %p58
      %p60 = scmp.ne.s32.totalorder %s46, %s47
      %p61 = scmp.eq.s32.totalorder %s25, 1
      %p62 = por %p60, %p61
      %p64 = scmp.ne.s32.totalorder %s47, %s63
      %p65 = scmp.eq.s32.totalorder %s25, 0
      %p66 = por %p64, %p65
      %s67 = sadd.s32 %s27, 1
      %s68 = sadd.s32 %s34, 1
      %s69 = ssub.s32 %s26, %s38
      %s70 = ssub.s32 %s67, %s68
      %s71 = sor.u32 %s69, %s70
      %p72 = scmp.eq.s32.totalorder %s71, 0
      %s74 = sadd.s32 %s73, 1
      %s75 = scalar_select %p72, %s73, %s74
      %p78 = pneg %p72
      %p79 = scmp.eq.s32.totalorder %s19, 1
      %p80 = por %p78, %p79
      %p81 = scmp.ne.s32.totalorder %s73, %s76
      %p82 = scmp.eq.s32.totalorder %s19, 0
      %p83 = por %p81, %p82
      %p84 = scmp.ne.s32.totalorder %s73, %s76
      %p85 = scmp.eq.s32.totalorder %s24, 1
      %p86 = por %p84, %p85
      %p87 = scmp.ne.s32.totalorder %s76, %s77
      %p88 = scmp.eq.s32.totalorder %s24, 0
      %p89 = por %p87, %p88
      %p90 = scmp.ne.s32.totalorder %s76, %s77
      %p91 = scmp.eq.s32.totalorder %s25, 1
      %p92 = por %p90, %p91
      %p94 = scmp.ne.s32.totalorder %s77, %s93
      %p95 = scmp.eq.s32.totalorder %s25, 0
      %p96 = por %p94, %p95
      %s97 = ssub.s32 %s27, %s34
      %p98 = scmp.eq.s32.totalorder %s97, 0
      %s100 = sadd.s32 %s99, 1
      %s101 = scalar_select %p98, %s99, %s100
      %p104 = pneg %p98
      %p105 = scmp.eq.s32.totalorder %s19, 1
      %p106 = por %p104, %p105
      %p107 = scmp.ne.s32.totalorder %s99, %s102
      %p108 = scmp.eq.s32.totalorder %s19, 0
      %p109 = por %p107, %p108
      %p110 = scmp.ne.s32.totalorder %s99, %s102
      %p111 = scmp.eq.s32.totalorder %s24, 1
      %p112 = por %p110, %p111
      %p113 = scmp.ne.s32.totalorder %s102, %s103
      %p114 = scmp.eq.s32.totalorder %s24, 0
      %p115 = por %p113, %p114
      %p116 = scmp.ne.s32.totalorder %s102, %s103
      %p117 = scmp.eq.s32.totalorder %s25, 1
      %p118 = por %p116, %p117
      %p120 = scmp.ne.s32.totalorder %s103, %s119
      %p121 = scmp.eq.s32.totalorder %s25, 0
      %p122 = por %p120, %p121
      %s123 = sadd.s32 %s27, 1
      %s124 = sadd.s32 %s34, 1
      %s125 = ssub.s32 %s123, %s124
      %p126 = scmp.eq.s32.totalorder %s125, 0
      %s128 = sadd.s32 %s127, 1
      %s129 = scalar_select %p126, %s127, %s128
      %p132 = pneg %p126
      %p133 = scmp.eq.s32.totalorder %s19, 1
      %p134 = por %p132, %p133
      %p135 = scmp.ne.s32.totalorder %s127, %s130
      %p136 = scmp.eq.s32.totalorder %s19, 0
      %p137 = por %p135, %p136
      %p138 = scmp.ne.s32.totalorder %s127, %s130
      %p139 = scmp.eq.s32.totalorder %s24, 1
      %p140 = por %p138, %p139
      %p141 = scmp.ne.s32.totalorder %s130, %s131
      %p142 = scmp.eq.s32.totalorder %s24, 0
      %p143 = por %p141, %p142
      %p144 = scmp.ne.s32.totalorder %s130, %s131
      %p145 = scmp.eq.s32.totalorder %s25, 1
      %p146 = por %p144, %p145
      %p148 = scmp.ne.s32.totalorder %s131, %s147
      %p149 = scmp.eq.s32.totalorder %s25, 0
      %p150 = por %p148, %p149
      %s151 = ssub.s32 %s27, %s34
      %p152 = scmp.eq.s32.totalorder %s151, 0
      %s154 = sadd.s32 %s153, 1
      %s155 = scalar_select %p152, %s153, %s154
      %p158 = pneg %p152
      %p159 = scmp.eq.s32.totalorder %s19, 1
      %p160 = por %p158, %p159
      %p161 = scmp.ne.s32.totalorder %s153, %s156
      %p162 = scmp.eq.s32.totalorder %s19, 0
      %p163 = por %p161, %p162
      %p164 = scmp.ne.s32.totalorder %s153, %s156
      %p165 = scmp.eq.s32.totalorder %s24, 1
      %p166 = por %p164, %p165
      %p167 = scmp.ne.s32.totalorder %s156, %s157
      %p168 = scmp.eq.s32.totalorder %s24, 0
      %p169 = por %p167, %p168
      %p170 = scmp.ne.s32.totalorder %s156, %s157
      %p171 = scmp.eq.s32.totalorder %s25, 1
      %p172 = por %p170, %p171
      %p174 = scmp.ne.s32.totalorder %s157, %s173
      %p175 = scmp.eq.s32.totalorder %s25, 0
      %p176 = por %p174, %p175
      %s178 = sadd.s32 %s177, 1
      %p181 = scmp.eq.s32.totalorder %s19, 1
      %p182 = scmp.ne.s32.totalorder %s177, %s179
      %p183 = scmp.eq.s32.totalorder %s19, 0
      %p184 = por %p182, %p183
      %p185 = scmp.ne.s32.totalorder %s177, %s179
      %p186 = scmp.eq.s32.totalorder %s24, 1
      %p187 = por %p185, %p186
      %p188 = scmp.ne.s32.totalorder %s179, %s180
      %p189 = scmp.eq.s32.totalorder %s24, 0
      %p190 = por %p188, %p189
      %p191 = scmp.ne.s32.totalorder %s179, %s180
      %p192 = scmp.eq.s32.totalorder %s25, 1
      %p193 = por %p191, %p192
      %p195 = scmp.ne.s32.totalorder %s180, %s194
      %p196 = scmp.eq.s32.totalorder %s25, 0
      %p197 = por %p195, %p196
      %s198 = ssub.s32 %s26, %s38
      %s199 = ssub.s32 %s27, %s34
      %s200 = sor.u32 %s198, %s199
      %p201 = scmp.eq.s32.totalorder %s200, 0
      %s203 = sadd.s32 %s202, 1
      %s204 = scalar_select %p201, %s202, %s203
      %p207 = pneg %p201
      %p208 = scmp.eq.s32.totalorder %s19, 1
      %p209 = por %p207, %p208
      %p210 = scmp.ne.s32.totalorder %s202, %s205
      %p211 = scmp.eq.s32.totalorder %s19, 0
      %p212 = por %p210, %p211
      %p213 = scmp.ne.s32.totalorder %s202, %s205
      %p214 = scmp.eq.s32.totalorder %s24, 1
      %p215 = por %p213, %p214
      %p216 = scmp.ne.s32.totalorder %s205, %s206
      %p217 = scmp.eq.s32.totalorder %s24, 0
      %p218 = por %p216, %p217
      %p219 = scmp.ne.s32.totalorder %s205, %s206
      %p220 = scmp.eq.s32.totalorder %s25, 1
      %p221 = por %p219, %p220
      %p223 = scmp.ne.s32.totalorder %s206, %s222
      %p224 = scmp.eq.s32.totalorder %s25, 0
      %p225 = por %p223, %p224
      %s226 = ssub.s32 %s26, %s38
      %s227 = ssub.s32 %s27, %s34
      %s228 = sor.u32 %s226, %s227
      %p229 = scmp.eq.s32.totalorder %s228, 0
      %s231 = sadd.s32 %s230, 1
      %s232 = scalar_select %p229, %s230, %s231
      %p235 = pneg %p229
      %p236 = scmp.eq.s32.totalorder %s19, 1
      %p237 = por %p235, %p236
      %p238 = scmp.ne.s32.totalorder %s230, %s233
      %p239 = scmp.eq.s32.totalorder %s19, 0
      %p240 = por %p238, %p239
      %p241 = scmp.ne.s32.totalorder %s230, %s233
      %p242 = scmp.eq.s32.totalorder %s24, 1
      %p243 = por %p241, %p242
      %p244 = scmp.ne.s32.totalorder %s233, %s234
      %p245 = scmp.eq.s32.totalorder %s24, 0
      %p246 = por %p244, %p245
      %p247 = scmp.ne.s32.totalorder %s233, %s234
      %p248 = scmp.eq.s32.totalorder %s25, 1
      %p249 = por %p247, %p248
      %p251 = scmp.ne.s32.totalorder %s234, %s250
      %p252 = scmp.eq.s32.totalorder %s25, 0
      %p253 = por %p251, %p252
      %s254 = ssub.s32 %s26, %s38
      %s255 = ssub.s32 %s27, %s34
      %s256 = sor.u32 %s254, %s255
      %p257 = scmp.eq.s32.totalorder %s256, 0
      %s259 = sadd.s32 %s258, 1
      %s260 = scalar_select %p257, %s258, %s259
      %p263 = pneg %p257
      %p264 = scmp.eq.s32.totalorder %s19, 1
      %p265 = por %p263, %p264
      %p266 = scmp.ne.s32.totalorder %s258, %s261
      %p267 = scmp.eq.s32.totalorder %s19, 0
      %p268 = por %p266, %p267
      %p269 = scmp.ne.s32.totalorder %s258, %s261
      %p270 = scmp.eq.s32.totalorder %s24, 1
      %p271 = por %p269, %p270
      %p272 = scmp.ne.s32.totalorder %s261, %s262
      %p273 = scmp.eq.s32.totalorder %s24, 0
      %p274 = por %p272, %p273
      %p275 = scmp.ne.s32.totalorder %s261, %s262
      %p276 = scmp.eq.s32.totalorder %s25, 1
      %p277 = por %p275, %p276
      %p279 = scmp.ne.s32.totalorder %s262, %s278
      %p280 = scmp.eq.s32.totalorder %s25, 0
      %p281 = por %p279, %p280
      %p282 = scmp.le.s32.totalorder 1, %s19
      %p283 = scmp.lt.s32.totalorder %s19, 3
      %p284 = pnand %p282, %p283
      %p285 = pneg %p284
      // Predicated region
      $region9: #{tpu_custom_call.1} parent=5 // pred_check
        _
      $region10: #{tpu_custom_call.1} parent=5 // pred_check_branch
        %287 = sbr.rel (%p284) target = $region12
      $region11: #{tpu_custom_call.1} parent=5 // pred_region
        %s288 = ssub.s32 %s19, 1
        // Predicated region
        $region13: #{tpu_custom_call.1} parent=11 // pred_check
          %p289 = pneg %p115
        $region14: #{tpu_custom_call.1} parent=11 // pred_check_branch
          %291 = sbr.rel (%p289) target = $region16
        $region15: #{tpu_custom_call.1} parent=11 // pred_region
          %s292 = smul.u32 3, %s29
          %p293 = scmp.lt.s32.totalorder %s292, 5
          %s294 = scalar_select %p293, %s292, 5
          %s295 = scalar_lea.vmem %s2, %s294
          %s296 = smul.u32 3, %s29
        $region16: #{tpu_custom_call.1} parent=11 // pred_fallthru
          _
        // Predicated region
        $region17: #{tpu_custom_call.1} parent=11 // pred_check
          %p297 = pneg %p143
        $region18: #{tpu_custom_call.1} parent=11 // pred_check_branch
          %299 = sbr.rel (%p297) target = $region20
        $region19: #{tpu_custom_call.1} parent=11 // pred_region
          %s300 = sadd.s32 %s29, 1
          %s301 = smul.u32 3, %s300
          %303 = vsyncadd [#allocation5], 0
          %s304 = scalar_lea.hbm %s3, %s301
          %s306 = sshll.u32 %s304, 4
          %s307 = int_to_ptr.hbm [resolvable:$true] %s306
          %s308 = sshll.u32 [#allocation4], 4
          %s309 = int_to_ptr.vmem [resolvable:$true] %s308
          %311 = dma.hbm_to_vmem [thread:$0]  %s307, 48, %s309, [#allocation5]
        $region20: #{tpu_custom_call.1} parent=11 // pred_fallthru
          _
        // Predicated region
        $region21: #{tpu_custom_call.1} parent=11 // pred_check
          %p312 = pneg %p169
        $region22: #{tpu_custom_call.1} parent=11 // pred_check_branch
          %314 = sbr.rel (%p312) target = $region24
        $region23: #{tpu_custom_call.1} parent=11 // pred_region
          %s315 = smul.u32 3, %s29
          %p316 = scmp.lt.s32.totalorder %s315, 2
          %s317 = scalar_select %p316, %s315, 2
          %s318 = scalar_lea.vmem %s4, %s317
          %s319 = smul.u32 3, %s29
        $region24: #{tpu_custom_call.1} parent=11 // pred_fallthru
          _
        // Predicated region
        $region25: #{tpu_custom_call.1} parent=11 // pred_check
          %p320 = pneg %p190
        $region26: #{tpu_custom_call.1} parent=11 // pred_check_branch
          %322 = sbr.rel (%p320) target = $region28
        $region27: #{tpu_custom_call.1} parent=11 // pred_region
          _
        $region28: #{tpu_custom_call.1} parent=11 // pred_fallthru
          _
      $region12: #{tpu_custom_call.1} parent=5 // pred_fallthru
        _
      %p323 = scmp.lt.s32.totalorder %s19, 2
      // Predicated region
      $region29: #{tpu_custom_call.1} parent=5 // pred_check
        %p324 = pneg %p323
      $region30: #{tpu_custom_call.1} parent=5 // pred_check_branch
        %326 = sbr.rel (%p324) target = $region32
      $region31: #{tpu_custom_call.1} parent=5 // pred_region
        // Predicated region
        $region33: #{tpu_custom_call.1} parent=31 // pred_check
          %p327 = pneg %p53
        $region34: #{tpu_custom_call.1} parent=31 // pred_check_branch
          %329 = sbr.rel (%p327) target = $region36
        $region35: #{tpu_custom_call.1} parent=31 // pred_region
          %s330 = smul.u32 3, %s27
          %p331 = scmp.lt.s32.totalorder %s26, 1
          %s332 = scalar_select %p331, %s26, 1
          %p333 = scmp.lt.s32.totalorder %s330, 5
          %s334 = scalar_select %p333, %s330, 5
          %s335 = smul.addr %s332, 6
          %s336 = sadd.s32 %s334, %s335
          %s337 = smul.addr %s336, 4
          %s338 = scalar_lea.vmem %s0, %s337
          %s339 = smul.u32 3, %s27
        $region36: #{tpu_custom_call.1} parent=31 // pred_fallthru
          _
        // Predicated region
        $region37: #{tpu_custom_call.1} parent=31 // pred_check
          %p340 = pneg %p83
        $region38: #{tpu_custom_call.1} parent=31 // pred_check_branch
          %342 = sbr.rel (%p340) target = $region40
        $region39: #{tpu_custom_call.1} parent=31 // pred_region
          %s343 = sadd.s32 %s27, 1
          %s344 = smul.u32 3, %s343
          %p345 = scmp.lt.s32.totalorder %s26, 1
          %s346 = scalar_select %p345, %s26, 1
          %p347 = scmp.lt.s32.totalorder %s344, 5
          %s348 = scalar_select %p347, %s344, 5
          %s349 = smul.addr %s346, 6
          %s350 = sadd.s32 %s348, %s349
          %s351 = smul.addr %s350, 4
          %s352 = scalar_lea.vmem %s1, %s351
          %s353 = sadd.s32 %s27, 1
          %s354 = smul.u32 3, %s353
        $region40: #{tpu_custom_call.1} parent=31 // pred_fallthru
          _
      $region32: #{tpu_custom_call.1} parent=5 // pred_fallthru
        _
      %p355 = scmp.le.s32.totalorder 1, %s19
      %p356 = scmp.lt.s32.totalorder %s19, 3
      %p357 = pnand %p355, %p356
      %p358 = pneg %p357
      // Predicated region
      $region41: #{tpu_custom_call.1} parent=5 // pred_check
        _
      $region42: #{tpu_custom_call.1} parent=5 // pred_check_branch
        %360 = sbr.rel (%p357) target = $region44
      $region43: #{tpu_custom_call.1} parent=5 // pred_region
        %s361 = ssub.s32 %s19, 1
        // Predicated region
        $region45: #{tpu_custom_call.1} parent=43 // pred_check
          %p362 = pneg %p143
        $region46: #{tpu_custom_call.1} parent=43 // pred_check_branch
          %364 = sbr.rel (%p362) target = $region48
        $region47: #{tpu_custom_call.1} parent=43 // pred_region
          %366 = dma.done [#allocation5], 48
        $region48: #{tpu_custom_call.1} parent=43 // pred_fallthru
          _
        %s367 = smul.u32 3, %s29
        %p368 = scmp.lt.s32.totalorder %s28, 1
        %s369 = scalar_select %p368, %s28, 1
        %p370 = scmp.lt.s32.totalorder %s367, 5
        %s371 = scalar_select %p370, %s367, 5
        %s372 = smul.addr %s369, 6
        %s373 = sadd.s32 %s371, %s372
        %s374 = smul.addr %s373, 4
        %s375 = scalar_lea.vmem %s0, %s374
        %p376 = pneg %p59
        %p377 = pneg %p56
        %s378 = sadd.s32 %s29, 1
        %s379 = smul.u32 3, %s378
        %p380 = scmp.lt.s32.totalorder %s28, 1
        %s381 = scalar_select %p380, %s28, 1
        %p382 = scmp.lt.s32.totalorder %s379, 5
        %s383 = scalar_select %p382, %s379, 5
        %s384 = smul.addr %s381, 6
        %s385 = sadd.s32 %s383, %s384
        %s386 = smul.addr %s385, 4
        %s387 = scalar_lea.vmem %s1, %s386
        %p388 = pneg %p89
        %p389 = pneg %p86
        %s390 = smul.u32 3, %s29
        %p391 = scmp.lt.s32.totalorder %s390, 5
        %s392 = scalar_select %p391, %s390, 5
        %s393 = scalar_lea.vmem %s2, %s392
        %p394 = pneg %p115
        %p395 = pneg %p112
        %p396 = pneg %p143
        %p397 = pneg %p140
        %s398 = smul.u32 3, %s29
        %p399 = scmp.lt.s32.totalorder %s398, 2
        %s400 = scalar_select %p399, %s398, 2
        %s401 = scalar_lea.vmem %s4, %s400
        %p402 = pneg %p169
        %p403 = pneg %p166
        %p404 = pneg %p190
        %p405 = pneg %p187
        %p406 = pneg %p218
        %p407 = pneg %p215
        %s408 = sand.u32 %s205, 1
        %s409 = scalar_lea.sflag [#allocation6], %s408
        %s410 = sand.u32 %s205, 1
        %s411 = smul.addr %s410, 24
        %s412 = scalar_lea.vmem [#allocation7], %s411
        %p413 = pneg %p246
        %p414 = pneg %p243
        %p415 = scmp.lt.s32.totalorder %s28, 1
        %s416 = scalar_select %p415, %s28, 1
        %p417 = scmp.lt.s32.totalorder %s29, 0
        %s418 = scalar_select %p417, %s29, 0
        %s419 = sadd.s32 %s418, %s416
        %s420 = smul.addr %s419, 8
        %s421 = scalar_lea.vmem %s7, %s420
        %p422 = pneg %p274
        %p423 = pneg %p271
        %p424 = scmp.lt.s32.totalorder %s28, 1
        %s425 = scalar_select %p424, %s28, 1
        %p426 = scmp.lt.s32.totalorder %s29, 0
        %s427 = scalar_select %p426, %s29, 0
        %s428 = sadd.s32 %s427, %s425
        %s429 = smul.addr %s428, 8
        %s430 = scalar_lea.vmem %s8, %s429
        %s431 = smul.u32 3, %s29
        %p432 = scmp.lt.s32.totalorder %s28, 1
        %s433 = scalar_select %p432, %s28, 1
        %p434 = scmp.lt.s32.totalorder %s431, 5
        %s435 = scalar_select %p434, %s431, 5
        %s436 = smul.addr %s433, 6
        %s437 = sadd.s32 %s435, %s436
        %s438 = smul.addr %s437, 4
        %s439 = scalar_lea.vmem %s0, %s438
        %s440 = smul.u32 3, %s29
        %s441 = sadd.s32 %s29, 1
        %s442 = smul.u32 3, %s441
        %p443 = scmp.lt.s32.totalorder %s28, 1
        %s444 = scalar_select %p443, %s28, 1
        %p445 = scmp.lt.s32.totalorder %s442, 5
        %s446 = scalar_select %p445, %s442, 5
        %s447 = smul.addr %s444, 6
        %s448 = sadd.s32 %s446, %s447
        %s449 = smul.addr %s448, 4
        %s450 = scalar_lea.vmem %s1, %s449
        %s451 = sadd.s32 %s29, 1
        %s452 = smul.u32 3, %s451
        %s453 = smul.u32 3, %s29
        %p454 = scmp.lt.s32.totalorder %s453, 5
        %s455 = scalar_select %p454, %s453, 5
        %s456 = scalar_lea.vmem %s2, %s455
        %s457 = smul.u32 3, %s29
        %s458 = sadd.s32 %s29, 1
        %s459 = smul.u32 3, %s458
        %s460 = smul.u32 3, %s29
        %p461 = scmp.lt.s32.totalorder %s460, 2
        %s462 = scalar_select %p461, %s460, 2
        %s463 = scalar_lea.vmem %s4, %s462
        %s464 = smul.u32 3, %s29
        %s465 = smul.u32 3, %s29
        %p466 = scmp.lt.s32.totalorder %s28, 1
        %s467 = scalar_select %p466, %s28, 1
        %p468 = scmp.lt.s32.totalorder %s29, 0
        %s469 = scalar_select %p468, %s29, 0
        %s470 = sadd.s32 %s469, %s467
        %s471 = smul.addr %s470, 8
        %s472 = scalar_lea.vmem %s7, %s471
        %p473 = scmp.lt.s32.totalorder %s28, 1
        %s474 = scalar_select %p473, %s28, 1
        %p475 = scmp.lt.s32.totalorder %s29, 0
        %s476 = scalar_select %p475, %s29, 0
        %s477 = sadd.s32 %s476, %s474
        %s478 = smul.addr %s477, 8
        %s479 = scalar_lea.vmem %s8, %s478
        %v480 = vld [vmem:[%s439] sm:$0xff]
        %v481 = vld [vmem:[%s439 + $0x8] sm:$0xf]
        %482 = vst [vmem:[#allocation2] sm:$0xff] %v480
        %483 = vst [vmem:[#allocation2 + $0x8] sm:$0xf] %v481
        %v484 = vld [vmem:[%s450] sm:$0xff]
        %485 = vst [vmem:[#allocation2 + $0xc] sm:$0xff] %v484
        %v486 = vld [vmem:[#allocation2] sm:$0xff]
        %v487 = vld [vmem:[#allocation2 + $0x8] sm:$0xff]
        %v488 = vld [vmem:[#allocation2 + $0x10] sm:$0xf]
        %492 = vrot.lane.b32.xlu0 %v486, 127
        %v493 = vpop.permute.xlu0 %492
        %494 = vrot.lane.b32.xlu0 %v487, 127
        %v495 = vpop.permute.xlu0 %494
        %496 = vrot.lane.b32.xlu0 %v488, 127
        %v497 = vpop.permute.xlu0 %496
        %v498 = vrot.slane %v493, 4
        %v499 = vrot.slane %v495, 4
        %v500 = vrot.slane %v497, 4
        %vm501 = vcmask 1043456
        %v502 = vsel %vm501, %v498, %v499
        %vm503 = vcmask 1039360
        %v504 = vsel %vm503, %v493, %v502
        %v505 = vsel %vm501, %v499, %v500
        %v506 = vsel %vm503, %v495, %v505
        %v510 = vadd.f32 %v486, %v504
        %v511 = vadd.f32 %v487, %v506
        %v512 = vadd.f32 %v488, %v497
        %513 = vrot.lane.b32.xlu0 %v486, 126
        %v514 = vpop.permute.xlu0 %513
        %515 = vrot.lane.b32.xlu0 %v487, 126
        %v516 = vpop.permute.xlu0 %515
        %517 = vrot.lane.b32.xlu0 %v488, 126
        %v518 = vpop.permute.xlu0 %517
        %v519 = vrot.slane %v514, 4
        %v520 = vrot.slane %v516, 4
        %v521 = vrot.slane %v518, 4
        %v522 = vsel %vm501, %v519, %v520
        %vm523 = vcmask 1031168
        %v524 = vsel %vm523, %v514, %v522
        %v525 = vsel %vm501, %v520, %v521
        %v526 = vsel %vm523, %v516, %v525
        %v530 = vadd.f32 %v510, %v524
        %v531 = vadd.f32 %v511, %v526
        %v532 = vadd.f32 %v512, %v518
        %536 = vrot.lane.b32.xlu0 %v530, 108
        %v537 = vpop.permute.xlu0 %536
        %538 = vrot.lane.b32.xlu0 %v531, 108
        %v539 = vpop.permute.xlu0 %538
        %540 = vrot.lane.b32.xlu0 %v532, 108
        %v541 = vpop.permute.xlu0 %540
        %v542 = vrot.slane %v537, 4
        %v543 = vrot.slane %v539, 4
        %v544 = vrot.slane %v541, 4
        %v545 = vsel %vm501, %v542, %v543
        %vm546 = vcmask 883712
        %v547 = vsel %vm546, %v537, %v545
        %v548 = vsel %vm501, %v543, %v544
        %v549 = vsel %vm546, %v539, %v548
        %v552 = vadd.f32 %v530, %v547
        %v553 = vadd.f32 %v531, %v549
        %554 = vrot.lane.b32.xlu0 %v530, 88
        %v555 = vpop.permute.xlu0 %554
        %556 = vrot.lane.b32.xlu0 %v531, 88
        %v557 = vpop.permute.xlu0 %556
        %558 = vrot.lane.b32.xlu0 %v532, 88
        %v559 = vpop.permute.xlu0 %558
        %v560 = vrot.slane %v555, 4
        %v561 = vrot.slane %v557, 4
        %v562 = vrot.slane %v559, 4
        %v563 = vsel %vm501, %v560, %v561
        %vm564 = vcmask 719872
        %v565 = vsel %vm564, %v555, %v563
        %v566 = vsel %vm501, %v561, %v562
        %v567 = vsel %vm564, %v557, %v566
        %v570 = vadd.f32 %v552, %v565
        %v571 = vadd.f32 %v553, %v567
        %v572 = vld [vmem:[%s456] sm:$0x7]
        %v574 = vperm.slane %v572, 0
        %v575 = vperm.slane %v572, 1
        %v576 = vperm.slane %v572, 2
        %v578 = vrot.slane %v575, 4
        %v579 = vsel %vm501, %v574, %v578
        %v581 = vmul.f32 %v570, %v579
        %v582 = vmul.f32 %v571, %v576
        %583 = vst [vmem:[#allocation3] sm:$0xff] %v581
        %584 = vst [vmem:[#allocation3 + $0x8] sm:$0xf] %v582
        %v585 = vld [vmem:[#allocation4] sm:$0x1]
        %v587 = vperm.slane %v585, 0
        %v590 = vrot.slane %v571, 4
        %v592 = vmul.f32 %v590, %v587
        %593 = vst [vmem:[#allocation3 + $0xc] sm:$0xf] %v592
        %v594 = vld [vmem:[#allocation3] sm:$0xff]
        %v595 = vld [vmem:[#allocation3 + $0x8] sm:$0xf]
        %v596 = vld [vmem:[#allocation3] sm:$0xff]
        %v597 = vld [vmem:[#allocation3 + $0x8] sm:$0xff]
        %v598 = vld [vmem:[%s5] sm:$0xff]
        %s599 = scalar_lea.vmem %s5, 8
        %v600 = vld [vmem:[%s599] sm:$0xff]
        %603 = vst [vmem:[#allocation1] ss:$2 sm:$0xff] %v596
        %s604 = scalar_lea.vmem [#allocation1], 16
        %605 = vst [vmem:[%s604] ss:$2 sm:$0xff] %v597
        %v606 = vld.sshfl [vmem:[#allocation1] sm:$0xff pattern:$0x75316420]
        %v607 = vld.sshfl [vmem:[#allocation1 + $0x8] sm:$0xff pattern:$0x75316420]
        %v608 = vld.sshfl [vmem:[#allocation1 + $0x10] sm:$0xff pattern:$0x75316420]
        %v609 = vld.sshfl [vmem:[#allocation1 + $0x18] sm:$0xff pattern:$0x75316420]
        %610 = vrot.lane.b32.xlu0 %v606, 127
        %v611 = vpop.permute.xlu0 %610
        %612 = vrot.lane.b32.xlu0 %v607, 127
        %v613 = vpop.permute.xlu0 %612
        %614 = vrot.lane.b32.xlu0 %v608, 127
        %v615 = vpop.permute.xlu0 %614
        %616 = vrot.lane.b32.xlu0 %v609, 127
        %v617 = vpop.permute.xlu0 %616
        %v618 = vsel %vm503, %v611, %v613
        %v619 = vsel %vm503, %v613, %v615
        %v620 = vsel %vm503, %v615, %v617
        %vm621 = vcmask 31744
        %v623 = vsel %vm621, %v600, 0
        %v625 = vsel %vm501, %v618, 0
        %v627 = vsel %vm501, %v619, 0
        %v629 = vsel %vm501, %v620, 0
        %631 = vmatpush.msra.mxu0 0.0
        %632 = vmatpush.msra.mxu0 0.0
        %633 = vmatpush.msra.mxu0 0.0
        %634 = vmatpush.msra.mxu0 0.0
        %635 = vmatpush.msra.mxu0 0.0
        %636 = vmatpush.msra.mxu0 0.0
        %637 = vmatpush.msra.mxu0 0.0
        %638 = vmatpush.msra.mxu0 0.0
        %639 = vmatpush.msra.mxu0 0.0
        %640 = vmatpush.msra.mxu0 0.0
        %641 = vmatpush.msra.mxu0 0.0
        %642 = vmatpush.msra.mxu0 0.0
        %643 = vmatpush.msra.mxu0 0.0
        %644 = vmatpush.msra.mxu0 0.0
        %645 = vmatpush.msra.mxu0 0.0
        %646 = vmatpush.msra.mxu0 %v625
        %647 = vmatmul.f32.gmra.mxu0 %v623
        %v648 = vpop.f32.mrf.mxu0
        %v649 = vadd.f32 0.0, %v648
        %650 = vdwg.mxu0
        %651 = vmatpush.msra.mxu0 0.0
        %652 = vmatpush.msra.mxu0 0.0
        %653 = vmatpush.msra.mxu0 0.0
        %654 = vmatpush.msra.mxu0 0.0
        %655 = vmatpush.msra.mxu0 0.0
        %656 = vmatpush.msra.mxu0 0.0
        %657 = vmatpush.msra.mxu0 0.0
        %658 = vmatpush.msra.mxu0 0.0
        %659 = vmatpush.msra.mxu0 0.0
        %660 = vmatpush.msra.mxu0 0.0
        %661 = vmatpush.msra.mxu0 0.0
        %662 = vmatpush.msra.mxu0 0.0
        %663 = vmatpush.msra.mxu0 0.0
        %664 = vmatpush.msra.mxu0 0.0
        %665 = vmatpush.msra.mxu0 0.0
        %666 = vmatpush.msra.mxu0 %v627
        %667 = vmatmul.f32.gmra.mxu0 %v623
        %v668 = vpop.f32.mrf.mxu0
        %v669 = vadd.f32 0.0, %v668
        %670 = vdwg.mxu0
        %671 = vmatpush.msra.mxu0 0.0
        %672 = vmatpush.msra.mxu0 0.0
        %673 = vmatpush.msra.mxu0 0.0
        %674 = vmatpush.msra.mxu0 0.0
        %675 = vmatpush.msra.mxu0 0.0
        %676 = vmatpush.msra.mxu0 0.0
        %677 = vmatpush.msra.mxu0 0.0
        %678 = vmatpush.msra.mxu0 0.0
        %679 = vmatpush.msra.mxu0 0.0
        %680 = vmatpush.msra.mxu0 0.0
        %681 = vmatpush.msra.mxu0 0.0
        %682 = vmatpush.msra.mxu0 0.0
        %683 = vmatpush.msra.mxu0 0.0
        %684 = vmatpush.msra.mxu0 0.0
        %685 = vmatpush.msra.mxu0 0.0
        %686 = vmatpush.msra.mxu0 %v629
        %687 = vmatmul.f32.gmra.mxu0 %v623
        %v688 = vpop.f32.mrf.mxu0
        %v689 = vadd.f32 0.0, %v688
        %690 = vdwg.mxu0
        %693 = vst [vmem:[#allocation1] ss:$2 sm:$0xff] %v594
        %s694 = scalar_lea.vmem [#allocation1], 16
        %695 = vst [vmem:[%s694] ss:$2 sm:$0xff] %v595
        %v696 = vld.sshfl [vmem:[#allocation1] sm:$0xff pattern:$0x75316420]
        %v697 = vld.sshfl [vmem:[#allocation1 + $0x8] sm:$0xff pattern:$0x75316420]
        %v698 = vld.sshfl [vmem:[#allocation1 + $0x10] sm:$0xff pattern:$0x75316420]
        %v700 = vsel %vm621, %v598, 0
        %v702 = vsel %vm501, %v696, 0
        %v704 = vsel %vm501, %v697, 0
        %v706 = vsel %vm501, %v698, 0
        %708 = vmatpush.msra.mxu0 0.0
        %709 = vmatpush.msra.mxu0 0.0
        %710 = vmatpush.msra.mxu0 0.0
        %711 = vmatpush.msra.mxu0 0.0
        %712 = vmatpush.msra.mxu0 0.0
        %713 = vmatpush.msra.mxu0 0.0
        %714 = vmatpush.msra.mxu0 0.0
        %715 = vmatpush.msra.mxu0 0.0
        %716 = vmatpush.msra.mxu0 0.0
        %717 = vmatpush.msra.mxu0 0.0
        %718 = vmatpush.msra.mxu0 0.0
        %719 = vmatpush.msra.mxu0 0.0
        %720 = vmatpush.msra.mxu0 0.0
        %721 = vmatpush.msra.mxu0 0.0
        %722 = vmatpush.msra.mxu0 0.0
        %723 = vmatpush.msra.mxu0 %v702
        %724 = vmatmul.f32.gmra.mxu0 %v700
        %v725 = vpop.f32.mrf.mxu0
        %v726 = vadd.f32 %v649, %v725
        %727 = vdwg.mxu0
        %728 = vmatpush.msra.mxu0 0.0
        %729 = vmatpush.msra.mxu0 0.0
        %730 = vmatpush.msra.mxu0 0.0
        %731 = vmatpush.msra.mxu0 0.0
        %732 = vmatpush.msra.mxu0 0.0
        %733 = vmatpush.msra.mxu0 0.0
        %734 = vmatpush.msra.mxu0 0.0
        %735 = vmatpush.msra.mxu0 0.0
        %736 = vmatpush.msra.mxu0 0.0
        %737 = vmatpush.msra.mxu0 0.0
        %738 = vmatpush.msra.mxu0 0.0
        %739 = vmatpush.msra.mxu0 0.0
        %740 = vmatpush.msra.mxu0 0.0
        %741 = vmatpush.msra.mxu0 0.0
        %742 = vmatpush.msra.mxu0 0.0
        %743 = vmatpush.msra.mxu0 %v704
        %744 = vmatmul.f32.gmra.mxu0 %v700
        %v745 = vpop.f32.mrf.mxu0
        %v746 = vadd.f32 %v669, %v745
        %747 = vdwg.mxu0
        %748 = vmatpush.msra.mxu0 0.0
        %749 = vmatpush.msra.mxu0 0.0
        %750 = vmatpush.msra.mxu0 0.0
        %751 = vmatpush.msra.mxu0 0.0
        %752 = vmatpush.msra.mxu0 0.0
        %753 = vmatpush.msra.mxu0 0.0
        %754 = vmatpush.msra.mxu0 0.0
        %755 = vmatpush.msra.mxu0 0.0
        %756 = vmatpush.msra.mxu0 0.0
        %757 = vmatpush.msra.mxu0 0.0
        %758 = vmatpush.msra.mxu0 0.0
        %759 = vmatpush.msra.mxu0 0.0
        %760 = vmatpush.msra.mxu0 0.0
        %761 = vmatpush.msra.mxu0 0.0
        %762 = vmatpush.msra.mxu0 0.0
        %763 = vmatpush.msra.mxu0 %v706
        %764 = vmatmul.f32.gmra.mxu0 %v700
        %v765 = vpop.f32.mrf.mxu0
        %v766 = vadd.f32 %v689, %v765
        %767 = vdwg.mxu0
        %s768 = scalar_lea.vmem %s5, 16
        %v769 = vld [vmem:[%s768] sm:$0xff]
        %770 = vst [vmem:[#allocation1] ss:$2 sm:$0xff] %v596
        %s771 = scalar_lea.vmem [#allocation1], 16
        %772 = vst [vmem:[%s771] ss:$2 sm:$0xff] %v597
        %v773 = vld.sshfl [vmem:[#allocation1] sm:$0xff pattern:$0x75316420]
        %v774 = vld.sshfl [vmem:[#allocation1 + $0x8] sm:$0xff pattern:$0x75316420]
        %v775 = vld.sshfl [vmem:[#allocation1 + $0x10] sm:$0xff pattern:$0x75316420]
        %v776 = vld.sshfl [vmem:[#allocation1 + $0x18] sm:$0xff pattern:$0x75316420]
        %777 = vrot.lane.b32.xlu0 %v773, 126
        %v778 = vpop.permute.xlu0 %777
        %779 = vrot.lane.b32.xlu0 %v774, 126
        %v780 = vpop.permute.xlu0 %779
        %781 = vrot.lane.b32.xlu0 %v775, 126
        %v782 = vpop.permute.xlu0 %781
        %783 = vrot.lane.b32.xlu0 %v776, 126
        %v784 = vpop.permute.xlu0 %783
        %v785 = vsel %vm523, %v778, %v780
        %v786 = vsel %vm523, %v780, %v782
        %v787 = vsel %vm523, %v782, %v784
        %v789 = vsel %vm621, %v769, 0
        %v791 = vsel %vm501, %v785, 0
        %v793 = vsel %vm501, %v786, 0
        %v795 = vsel %vm501, %v787, 0
        %797 = vmatpush.msra.mxu0 0.0
        %798 = vmatpush.msra.mxu0 0.0
        %799 = vmatpush.msra.mxu0 0.0
        %800 = vmatpush.msra.mxu0 0.0
        %801 = vmatpush.msra.mxu0 0.0
        %802 = vmatpush.msra.mxu0 0.0
        %803 = vmatpush.msra.mxu0 0.0
        %804 = vmatpush.msra.mxu0 0.0
        %805 = vmatpush.msra.mxu0 0.0
        %806 = vmatpush.msra.mxu0 0.0
        %807 = vmatpush.msra.mxu0 0.0
        %808 = vmatpush.msra.mxu0 0.0
        %809 = vmatpush.msra.mxu0 0.0
        %810 = vmatpush.msra.mxu0 0.0
        %811 = vmatpush.msra.mxu0 0.0
        %812 = vmatpush.msra.mxu0 %v791
        %813 = vmatmul.f32.gmra.mxu0 %v789
        %v814 = vpop.f32.mrf.mxu0
        %v815 = vadd.f32 0.0, %v814
        %816 = vdwg.mxu0
        %817 = vmatpush.msra.mxu0 0.0
        %818 = vmatpush.msra.mxu0 0.0
        %819 = vmatpush.msra.mxu0 0.0
        %820 = vmatpush.msra.mxu0 0.0
        %821 = vmatpush.msra.mxu0 0.0
        %822 = vmatpush.msra.mxu0 0.0
        %823 = vmatpush.msra.mxu0 0.0
        %824 = vmatpush.msra.mxu0 0.0
        %825 = vmatpush.msra.mxu0 0.0
        %826 = vmatpush.msra.mxu0 0.0
        %827 = vmatpush.msra.mxu0 0.0
        %828 = vmatpush.msra.mxu0 0.0
        %829 = vmatpush.msra.mxu0 0.0
        %830 = vmatpush.msra.mxu0 0.0
        %831 = vmatpush.msra.mxu0 0.0
        %832 = vmatpush.msra.mxu0 %v793
        %833 = vmatmul.f32.gmra.mxu0 %v789
        %v834 = vpop.f32.mrf.mxu0
        %v835 = vadd.f32 0.0, %v834
        %836 = vdwg.mxu0
        %837 = vmatpush.msra.mxu0 0.0
        %838 = vmatpush.msra.mxu0 0.0
        %839 = vmatpush.msra.mxu0 0.0
        %840 = vmatpush.msra.mxu0 0.0
        %841 = vmatpush.msra.mxu0 0.0
        %842 = vmatpush.msra.mxu0 0.0
        %843 = vmatpush.msra.mxu0 0.0
        %844 = vmatpush.msra.mxu0 0.0
        %845 = vmatpush.msra.mxu0 0.0
        %846 = vmatpush.msra.mxu0 0.0
        %847 = vmatpush.msra.mxu0 0.0
        %848 = vmatpush.msra.mxu0 0.0
        %849 = vmatpush.msra.mxu0 0.0
        %850 = vmatpush.msra.mxu0 0.0
        %851 = vmatpush.msra.mxu0 0.0
        %852 = vmatpush.msra.mxu0 %v795
        %853 = vmatmul.f32.gmra.mxu0 %v789
        %v854 = vpop.f32.mrf.mxu0
        %v855 = vadd.f32 0.0, %v854
        %856 = vdwg.mxu0
        %v857 = vadd.f32 %v726, %v815
        %v858 = vadd.f32 %v746, %v835
        %v859 = vadd.f32 %v766, %v855
        %s860 = scalar_lea.vmem %s5, 24
        %v861 = vld [vmem:[%s860] sm:$0xff]
        %862 = vst [vmem:[#allocation1] ss:$2 sm:$0xff] %v596
        %s863 = scalar_lea.vmem [#allocation1], 16
        %864 = vst [vmem:[%s863] ss:$2 sm:$0xff] %v597
        %v865 = vld.sshfl [vmem:[#allocation1] sm:$0xff pattern:$0x75316420]
        %v866 = vld.sshfl [vmem:[#allocation1 + $0x8] sm:$0xff pattern:$0x75316420]
        %v867 = vld.sshfl [vmem:[#allocation1 + $0x10] sm:$0xff pattern:$0x75316420]
        %v868 = vld.sshfl [vmem:[#allocation1 + $0x18] sm:$0xff pattern:$0x75316420]
        %869 = vrot.lane.b32.xlu0 %v865, 108
        %v870 = vpop.permute.xlu0 %869
        %871 = vrot.lane.b32.xlu0 %v866, 108
        %v872 = vpop.permute.xlu0 %871
        %873 = vrot.lane.b32.xlu0 %v867, 108
        %v874 = vpop.permute.xlu0 %873
        %875 = vrot.lane.b32.xlu0 %v868, 108
        %v876 = vpop.permute.xlu0 %875
        %v877 = vsel %vm546, %v870, %v872
        %v878 = vsel %vm546, %v872, %v874
        %v879 = vsel %vm546, %v874, %v876
        %v881 = vsel %vm621, %v861, 0
        %v883 = vsel %vm501, %v877, 0
        %v885 = vsel %vm501, %v878, 0
        %v887 = vsel %vm501, %v879, 0
        %889 = vmatpush.msra.mxu0 0.0
        %890 = vmatpush.msra.mxu0 0.0
        %891 = vmatpush.msra.mxu0 0.0
        %892 = vmatpush.msra.mxu0 0.0
        %893 = vmatpush.msra.mxu0 0.0
        %894 = vmatpush.msra.mxu0 0.0
        %895 = vmatpush.msra.mxu0 0.0
        %896 = vmatpush.msra.mxu0 0.0
        %897 = vmatpush.msra.mxu0 0.0
        %898 = vmatpush.msra.mxu0 0.0
        %899 = vmatpush.msra.mxu0 0.0
        %900 = vmatpush.msra.mxu0 0.0
        %901 = vmatpush.msra.mxu0 0.0
        %902 = vmatpush.msra.mxu0 0.0
        %903 = vmatpush.msra.mxu0 0.0
        %904 = vmatpush.msra.mxu0 %v883
        %905 = vmatmul.f32.gmra.mxu0 %v881
        %v906 = vpop.f32.mrf.mxu0
        %v907 = vadd.f32 0.0, %v906
        %908 = vdwg.mxu0
        %909 = vmatpush.msra.mxu0 0.0
        %910 = vmatpush.msra.mxu0 0.0
        %911 = vmatpush.msra.mxu0 0.0
        %912 = vmatpush.msra.mxu0 0.0
        %913 = vmatpush.msra.mxu0 0.0
        %914 = vmatpush.msra.mxu0 0.0
        %915 = vmatpush.msra.mxu0 0.0
        %916 = vmatpush.msra.mxu0 0.0
        %917 = vmatpush.msra.mxu0 0.0
        %918 = vmatpush.msra.mxu0 0.0
        %919 = vmatpush.msra.mxu0 0.0
        %920 = vmatpush.msra.mxu0 0.0
        %921 = vmatpush.msra.mxu0 0.0
        %922 = vmatpush.msra.mxu0 0.0
        %923 = vmatpush.msra.mxu0 0.0
        %924 = vmatpush.msra.mxu0 %v885
        %925 = vmatmul.f32.gmra.mxu0 %v881
        %v926 = vpop.f32.mrf.mxu0
        %v927 = vadd.f32 0.0, %v926
        %928 = vdwg.mxu0
        %929 = vmatpush.msra.mxu0 0.0
        %930 = vmatpush.msra.mxu0 0.0
        %931 = vmatpush.msra.mxu0 0.0
        %932 = vmatpush.msra.mxu0 0.0
        %933 = vmatpush.msra.mxu0 0.0
        %934 = vmatpush.msra.mxu0 0.0
        %935 = vmatpush.msra.mxu0 0.0
        %936 = vmatpush.msra.mxu0 0.0
        %937 = vmatpush.msra.mxu0 0.0
        %938 = vmatpush.msra.mxu0 0.0
        %939 = vmatpush.msra.mxu0 0.0
        %940 = vmatpush.msra.mxu0 0.0
        %941 = vmatpush.msra.mxu0 0.0
        %942 = vmatpush.msra.mxu0 0.0
        %943 = vmatpush.msra.mxu0 0.0
        %944 = vmatpush.msra.mxu0 %v887
        %945 = vmatmul.f32.gmra.mxu0 %v881
        %v946 = vpop.f32.mrf.mxu0
        %v947 = vadd.f32 0.0, %v946
        %948 = vdwg.mxu0
        %v949 = vadd.f32 %v857, %v907
        %v950 = vadd.f32 %v858, %v927
        %v951 = vadd.f32 %v859, %v947
        %s952 = scalar_lea.vmem %s5, 32
        %v953 = vld [vmem:[%s952] sm:$0xff]
        %954 = vst [vmem:[#allocation1] ss:$2 sm:$0xff] %v596
        %s955 = scalar_lea.vmem [#allocation1], 16
        %956 = vst [vmem:[%s955] ss:$2 sm:$0xff] %v597
        %v957 = vld.sshfl [vmem:[#allocation1] sm:$0xff pattern:$0x75316420]
        %v958 = vld.sshfl [vmem:[#allocation1 + $0x8] sm:$0xff pattern:$0x75316420]
        %v959 = vld.sshfl [vmem:[#allocation1 + $0x10] sm:$0xff pattern:$0x75316420]
        %v960 = vld.sshfl [vmem:[#allocation1 + $0x18] sm:$0xff pattern:$0x75316420]
        %961 = vrot.lane.b32.xlu0 %v957, 107
        %v962 = vpop.permute.xlu0 %961
        %963 = vrot.lane.b32.xlu0 %v958, 107
        %v964 = vpop.permute.xlu0 %963
        %965 = vrot.lane.b32.xlu0 %v959, 107
        %v966 = vpop.permute.xlu0 %965
        %967 = vrot.lane.b32.xlu0 %v960, 107
        %v968 = vpop.permute.xlu0 %967
        %vm969 = vcmask 875520
        %v970 = vsel %vm969, %v962, %v964
        %v971 = vsel %vm969, %v964, %v966
        %v972 = vsel %vm969, %v966, %v968
        %v974 = vsel %vm621, %v953, 0
        %v976 = vsel %vm501, %v970, 0
        %v978 = vsel %vm501, %v971, 0
        %v980 = vsel %vm501, %v972, 0
        %982 = vmatpush.msra.mxu0 0.0
        %983 = vmatpush.msra.mxu0 0.0
        %984 = vmatpush.msra.mxu0 0.0
        %985 = vmatpush.msra.mxu0 0.0
        %986 = vmatpush.msra.mxu0 0.0
        %987 = vmatpush.msra.mxu0 0.0
        %988 = vmatpush.msra.mxu0 0.0
        %989 = vmatpush.msra.mxu0 0.0
        %990 = vmatpush.msra.mxu0 0.0
        %991 = vmatpush.msra.mxu0 0.0
        %992 = vmatpush.msra.mxu0 0.0
        %993 = vmatpush.msra.mxu0 0.0
        %994 = vmatpush.msra.mxu0 0.0
        %995 = vmatpush.msra.mxu0 0.0
        %996 = vmatpush.msra.mxu0 0.0
        %997 = vmatpush.msra.mxu0 %v976
        %998 = vmatmul.f32.gmra.mxu0 %v974
        %v999 = vpop.f32.mrf.mxu0
        %v1000 = vadd.f32 0.0, %v999
        %1001 = vdwg.mxu0
        %1002 = vmatpush.msra.mxu0 0.0
        %1003 = vmatpush.msra.mxu0 0.0
        %1004 = vmatpush.msra.mxu0 0.0
        %1005 = vmatpush.msra.mxu0 0.0
        %1006 = vmatpush.msra.mxu0 0.0
        %1007 = vmatpush.msra.mxu0 0.0
        %1008 = vmatpush.msra.mxu0 0.0
        %1009 = vmatpush.msra.mxu0 0.0
        %1010 = vmatpush.msra.mxu0 0.0
        %1011 = vmatpush.msra.mxu0 0.0
        %1012 = vmatpush.msra.mxu0 0.0
        %1013 = vmatpush.msra.mxu0 0.0
        %1014 = vmatpush.msra.mxu0 0.0
        %1015 = vmatpush.msra.mxu0 0.0
        %1016 = vmatpush.msra.mxu0 0.0
        %1017 = vmatpush.msra.mxu0 %v978
        %1018 = vmatmul.f32.gmra.mxu0 %v974
        %v1019 = vpop.f32.mrf.mxu0
        %v1020 = vadd.f32 0.0, %v1019
        %1021 = vdwg.mxu0
        %1022 = vmatpush.msra.mxu0 0.0
        %1023 = vmatpush.msra.mxu0 0.0
        %1024 = vmatpush.msra.mxu0 0.0
        %1025 = vmatpush.msra.mxu0 0.0
        %1026 = vmatpush.msra.mxu0 0.0
        %1027 = vmatpush.msra.mxu0 0.0
        %1028 = vmatpush.msra.mxu0 0.0
        %1029 = vmatpush.msra.mxu0 0.0
        %1030 = vmatpush.msra.mxu0 0.0
        %1031 = vmatpush.msra.mxu0 0.0
        %1032 = vmatpush.msra.mxu0 0.0
        %1033 = vmatpush.msra.mxu0 0.0
        %1034 = vmatpush.msra.mxu0 0.0
        %1035 = vmatpush.msra.mxu0 0.0
        %1036 = vmatpush.msra.mxu0 0.0
        %1037 = vmatpush.msra.mxu0 %v980
        %1038 = vmatmul.f32.gmra.mxu0 %v974
        %v1039 = vpop.f32.mrf.mxu0
        %v1040 = vadd.f32 0.0, %v1039
        %1041 = vdwg.mxu0
        %v1042 = vadd.f32 %v949, %v1000
        %v1043 = vadd.f32 %v950, %v1020
        %v1044 = vadd.f32 %v951, %v1040
        %s1045 = scalar_lea.vmem %s5, 40
        %v1046 = vld [vmem:[%s1045] sm:$0xff]
        %1047 = vst [vmem:[#allocation1] ss:$2 sm:$0xff] %v596
        %s1048 = scalar_lea.vmem [#allocation1], 16
        %1049 = vst [vmem:[%s1048] ss:$2 sm:$0xff] %v597
        %v1050 = vld.sshfl [vmem:[#allocation1] sm:$0xff pattern:$0x75316420]
        %v1051 = vld.sshfl [vmem:[#allocation1 + $0x8] sm:$0xff pattern:$0x75316420]
        %v1052 = vld.sshfl [vmem:[#allocation1 + $0x10] sm:$0xff pattern:$0x75316420]
        %v1053 = vld.sshfl [vmem:[#allocation1 + $0x18] sm:$0xff pattern:$0x75316420]
        %1054 = vrot.lane.b32.xlu0 %v1050, 106
        %v1055 = vpop.permute.xlu0 %1054
        %1056 = vrot.lane.b32.xlu0 %v1051, 106
        %v1057 = vpop.permute.xlu0 %1056
        %1058 = vrot.lane.b32.xlu0 %v1052, 106
        %v1059 = vpop.permute.xlu0 %1058
        %1060 = vrot.lane.b32.xlu0 %v1053, 106
        %v1061 = vpop.permute.xlu0 %1060
        %vm1062 = vcmask 867328
        %v1063 = vsel %vm1062, %v1055, %v1057
        %v1064 = vsel %vm1062, %v1057, %v1059
        %v1065 = vsel %vm1062, %v1059, %v1061
        %v1067 = vsel %vm621, %v1046, 0
        %v1069 = vsel %vm501, %v1063, 0
        %v1071 = vsel %vm501, %v1064, 0
        %v1073 = vsel %vm501, %v1065, 0
        %1075 = vmatpush.msra.mxu0 0.0
        %1076 = vmatpush.msra.mxu0 0.0
        %1077 = vmatpush.msra.mxu0 0.0
        %1078 = vmatpush.msra.mxu0 0.0
        %1079 = vmatpush.msra.mxu0 0.0
        %1080 = vmatpush.msra.mxu0 0.0
        %1081 = vmatpush.msra.mxu0 0.0
        %1082 = vmatpush.msra.mxu0 0.0
        %1083 = vmatpush.msra.mxu0 0.0
        %1084 = vmatpush.msra.mxu0 0.0
        %1085 = vmatpush.msra.mxu0 0.0
        %1086 = vmatpush.msra.mxu0 0.0
        %1087 = vmatpush.msra.mxu0 0.0
        %1088 = vmatpush.msra.mxu0 0.0
        %1089 = vmatpush.msra.mxu0 0.0
        %1090 = vmatpush.msra.mxu0 %v1069
        %1091 = vmatmul.f32.gmra.mxu0 %v1067
        %v1092 = vpop.f32.mrf.mxu0
        %v1093 = vadd.f32 0.0, %v1092
        %1094 = vdwg.mxu0
        %1095 = vmatpush.msra.mxu0 0.0
        %1096 = vmatpush.msra.mxu0 0.0
        %1097 = vmatpush.msra.mxu0 0.0
        %1098 = vmatpush.msra.mxu0 0.0
        %1099 = vmatpush.msra.mxu0 0.0
        %1100 = vmatpush.msra.mxu0 0.0
        %1101 = vmatpush.msra.mxu0 0.0
        %1102 = vmatpush.msra.mxu0 0.0
        %1103 = vmatpush.msra.mxu0 0.0
        %1104 = vmatpush.msra.mxu0 0.0
        %1105 = vmatpush.msra.mxu0 0.0
        %1106 = vmatpush.msra.mxu0 0.0
        %1107 = vmatpush.msra.mxu0 0.0
        %1108 = vmatpush.msra.mxu0 0.0
        %1109 = vmatpush.msra.mxu0 0.0
        %1110 = vmatpush.msra.mxu0 %v1071
        %1111 = vmatmul.f32.gmra.mxu0 %v1067
        %v1112 = vpop.f32.mrf.mxu0
        %v1113 = vadd.f32 0.0, %v1112
        %1114 = vdwg.mxu0
        %1115 = vmatpush.msra.mxu0 0.0
        %1116 = vmatpush.msra.mxu0 0.0
        %1117 = vmatpush.msra.mxu0 0.0
        %1118 = vmatpush.msra.mxu0 0.0
        %1119 = vmatpush.msra.mxu0 0.0
        %1120 = vmatpush.msra.mxu0 0.0
        %1121 = vmatpush.msra.mxu0 0.0
        %1122 = vmatpush.msra.mxu0 0.0
        %1123 = vmatpush.msra.mxu0 0.0
        %1124 = vmatpush.msra.mxu0 0.0
        %1125 = vmatpush.msra.mxu0 0.0
        %1126 = vmatpush.msra.mxu0 0.0
        %1127 = vmatpush.msra.mxu0 0.0
        %1128 = vmatpush.msra.mxu0 0.0
        %1129 = vmatpush.msra.mxu0 0.0
        %1130 = vmatpush.msra.mxu0 %v1073
        %1131 = vmatmul.f32.gmra.mxu0 %v1067
        %v1132 = vpop.f32.mrf.mxu0
        %v1133 = vadd.f32 0.0, %v1132
        %1134 = vdwg.mxu0
        %v1135 = vadd.f32 %v1042, %v1093
        %v1136 = vadd.f32 %v1043, %v1113
        %v1137 = vadd.f32 %v1044, %v1133
        %s1138 = scalar_lea.vmem %s5, 48
        %v1139 = vld [vmem:[%s1138] sm:$0xff]
        %1140 = vst [vmem:[#allocation1] ss:$2 sm:$0xff] %v596
        %s1141 = scalar_lea.vmem [#allocation1], 16
        %1142 = vst [vmem:[%s1141] ss:$2 sm:$0xff] %v597
        %v1143 = vld.sshfl [vmem:[#allocation1] sm:$0xff pattern:$0x75316420]
        %v1144 = vld.sshfl [vmem:[#allocation1 + $0x8] sm:$0xff pattern:$0x75316420]
        %v1145 = vld.sshfl [vmem:[#allocation1 + $0x10] sm:$0xff pattern:$0x75316420]
        %v1146 = vld.sshfl [vmem:[#allocation1 + $0x18] sm:$0xff pattern:$0x75316420]
        %1147 = vrot.lane.b32.xlu0 %v1143, 88
        %v1148 = vpop.permute.xlu0 %1147
        %1149 = vrot.lane.b32.xlu0 %v1144, 88
        %v1150 = vpop.permute.xlu0 %1149
        %1151 = vrot.lane.b32.xlu0 %v1145, 88
        %v1152 = vpop.permute.xlu0 %1151
        %1153 = vrot.lane.b32.xlu0 %v1146, 88
        %v1154 = vpop.permute.xlu0 %1153
        %v1155 = vsel %vm564, %v1148, %v1150
        %v1156 = vsel %vm564, %v1150, %v1152
        %v1157 = vsel %vm564, %v1152, %v1154
        %v1159 = vsel %vm621, %v1139, 0
        %v1161 = vsel %vm501, %v1155, 0
        %v1163 = vsel %vm501, %v1156, 0
        %v1165 = vsel %vm501, %v1157, 0
        %1167 = vmatpush.msra.mxu0 0.0
        %1168 = vmatpush.msra.mxu0 0.0
        %1169 = vmatpush.msra.mxu0 0.0
        %1170 = vmatpush.msra.mxu0 0.0
        %1171 = vmatpush.msra.mxu0 0.0
        %1172 = vmatpush.msra.mxu0 0.0
        %1173 = vmatpush.msra.mxu0 0.0
        %1174 = vmatpush.msra.mxu0 0.0
        %1175 = vmatpush.msra.mxu0 0.0
        %1176 = vmatpush.msra.mxu0 0.0
        %1177 = vmatpush.msra.mxu0 0.0
        %1178 = vmatpush.msra.mxu0 0.0
        %1179 = vmatpush.msra.mxu0 0.0
        %1180 = vmatpush.msra.mxu0 0.0
        %1181 = vmatpush.msra.mxu0 0.0
        %1182 = vmatpush.msra.mxu0 %v1161
        %1183 = vmatmul.f32.gmra.mxu0 %v1159
        %v1184 = vpop.f32.mrf.mxu0
        %v1185 = vadd.f32 0.0, %v1184
        %1186 = vdwg.mxu0
        %1187 = vmatpush.msra.mxu0 0.0
        %1188 = vmatpush.msra.mxu0 0.0
        %1189 = vmatpush.msra.mxu0 0.0
        %1190 = vmatpush.msra.mxu0 0.0
        %1191 = vmatpush.msra.mxu0 0.0
        %1192 = vmatpush.msra.mxu0 0.0
        %1193 = vmatpush.msra.mxu0 0.0
        %1194 = vmatpush.msra.mxu0 0.0
        %1195 = vmatpush.msra.mxu0 0.0
        %1196 = vmatpush.msra.mxu0 0.0
        %1197 = vmatpush.msra.mxu0 0.0
        %1198 = vmatpush.msra.mxu0 0.0
        %1199 = vmatpush.msra.mxu0 0.0
        %1200 = vmatpush.msra.mxu0 0.0
        %1201 = vmatpush.msra.mxu0 0.0
        %1202 = vmatpush.msra.mxu0 %v1163
        %1203 = vmatmul.f32.gmra.mxu0 %v1159
        %v1204 = vpop.f32.mrf.mxu0
        %v1205 = vadd.f32 0.0, %v1204
        %1206 = vdwg.mxu0
        %1207 = vmatpush.msra.mxu0 0.0
        %1208 = vmatpush.msra.mxu0 0.0
        %1209 = vmatpush.msra.mxu0 0.0
        %1210 = vmatpush.msra.mxu0 0.0
        %1211 = vmatpush.msra.mxu0 0.0
        %1212 = vmatpush.msra.mxu0 0.0
        %1213 = vmatpush.msra.mxu0 0.0
        %1214 = vmatpush.msra.mxu0 0.0
        %1215 = vmatpush.msra.mxu0 0.0
        %1216 = vmatpush.msra.mxu0 0.0
        %1217 = vmatpush.msra.mxu0 0.0
        %1218 = vmatpush.msra.mxu0 0.0
        %1219 = vmatpush.msra.mxu0 0.0
        %1220 = vmatpush.msra.mxu0 0.0
        %1221 = vmatpush.msra.mxu0 0.0
        %1222 = vmatpush.msra.mxu0 %v1165
        %1223 = vmatmul.f32.gmra.mxu0 %v1159
        %v1224 = vpop.f32.mrf.mxu0
        %v1225 = vadd.f32 0.0, %v1224
        %1226 = vdwg.mxu0
        %v1227 = vadd.f32 %v1135, %v1185
        %v1228 = vadd.f32 %v1136, %v1205
        %v1229 = vadd.f32 %v1137, %v1225
        %s1230 = scalar_lea.vmem %s5, 56
        %v1231 = vld [vmem:[%s1230] sm:$0xff]
        %1232 = vst [vmem:[#allocation1] ss:$2 sm:$0xff] %v596
        %s1233 = scalar_lea.vmem [#allocation1], 16
        %1234 = vst [vmem:[%s1233] ss:$2 sm:$0xff] %v597
        %v1235 = vld.sshfl [vmem:[#allocation1] sm:$0xff pattern:$0x75316420]
        %v1236 = vld.sshfl [vmem:[#allocation1 + $0x8] sm:$0xff pattern:$0x75316420]
        %v1237 = vld.sshfl [vmem:[#allocation1 + $0x10] sm:$0xff pattern:$0x75316420]
        %v1238 = vld.sshfl [vmem:[#allocation1 + $0x18] sm:$0xff pattern:$0x75316420]
        %1239 = vrot.lane.b32.xlu0 %v1235, 87
        %v1240 = vpop.permute.xlu0 %1239
        %1241 = vrot.lane.b32.xlu0 %v1236, 87
        %v1242 = vpop.permute.xlu0 %1241
        %1243 = vrot.lane.b32.xlu0 %v1237, 87
        %v1244 = vpop.permute.xlu0 %1243
        %1245 = vrot.lane.b32.xlu0 %v1238, 87
        %v1246 = vpop.permute.xlu0 %1245
        %vm1247 = vcmask 711680
        %v1248 = vsel %vm1247, %v1240, %v1242
        %v1249 = vsel %vm1247, %v1242, %v1244
        %v1250 = vsel %vm1247, %v1244, %v1246
        %v1252 = vsel %vm621, %v1231, 0
        %v1254 = vsel %vm501, %v1248, 0
        %v1256 = vsel %vm501, %v1249, 0
        %v1258 = vsel %vm501, %v1250, 0
        %1260 = vmatpush.msra.mxu0 0.0
        %1261 = vmatpush.msra.mxu0 0.0
        %1262 = vmatpush.msra.mxu0 0.0
        %1263 = vmatpush.msra.mxu0 0.0
        %1264 = vmatpush.msra.mxu0 0.0
        %1265 = vmatpush.msra.mxu0 0.0
        %1266 = vmatpush.msra.mxu0 0.0
        %1267 = vmatpush.msra.mxu0 0.0
        %1268 = vmatpush.msra.mxu0 0.0
        %1269 = vmatpush.msra.mxu0 0.0
        %1270 = vmatpush.msra.mxu0 0.0
        %1271 = vmatpush.msra.mxu0 0.0
        %1272 = vmatpush.msra.mxu0 0.0
        %1273 = vmatpush.msra.mxu0 0.0
        %1274 = vmatpush.msra.mxu0 0.0
        %1275 = vmatpush.msra.mxu0 %v1254
        %1276 = vmatmul.f32.gmra.mxu0 %v1252
        %v1277 = vpop.f32.mrf.mxu0
        %v1278 = vadd.f32 0.0, %v1277
        %1279 = vdwg.mxu0
        %1280 = vmatpush.msra.mxu0 0.0
        %1281 = vmatpush.msra.mxu0 0.0
        %1282 = vmatpush.msra.mxu0 0.0
        %1283 = vmatpush.msra.mxu0 0.0
        %1284 = vmatpush.msra.mxu0 0.0
        %1285 = vmatpush.msra.mxu0 0.0
        %1286 = vmatpush.msra.mxu0 0.0
        %1287 = vmatpush.msra.mxu0 0.0
        %1288 = vmatpush.msra.mxu0 0.0
        %1289 = vmatpush.msra.mxu0 0.0
        %1290 = vmatpush.msra.mxu0 0.0
        %1291 = vmatpush.msra.mxu0 0.0
        %1292 = vmatpush.msra.mxu0 0.0
        %1293 = vmatpush.msra.mxu0 0.0
        %1294 = vmatpush.msra.mxu0 0.0
        %1295 = vmatpush.msra.mxu0 %v1256
        %1296 = vmatmul.f32.gmra.mxu0 %v1252
        %v1297 = vpop.f32.mrf.mxu0
        %v1298 = vadd.f32 0.0, %v1297
        %1299 = vdwg.mxu0
        %1300 = vmatpush.msra.mxu0 0.0
        %1301 = vmatpush.msra.mxu0 0.0
        %1302 = vmatpush.msra.mxu0 0.0
        %1303 = vmatpush.msra.mxu0 0.0
        %1304 = vmatpush.msra.mxu0 0.0
        %1305 = vmatpush.msra.mxu0 0.0
        %1306 = vmatpush.msra.mxu0 0.0
        %1307 = vmatpush.msra.mxu0 0.0
        %1308 = vmatpush.msra.mxu0 0.0
        %1309 = vmatpush.msra.mxu0 0.0
        %1310 = vmatpush.msra.mxu0 0.0
        %1311 = vmatpush.msra.mxu0 0.0
        %1312 = vmatpush.msra.mxu0 0.0
        %1313 = vmatpush.msra.mxu0 0.0
        %1314 = vmatpush.msra.mxu0 0.0
        %1315 = vmatpush.msra.mxu0 %v1258
        %1316 = vmatmul.f32.gmra.mxu0 %v1252
        %v1317 = vpop.f32.mrf.mxu0
        %v1318 = vadd.f32 0.0, %v1317
        %1319 = vdwg.mxu0
        %v1320 = vadd.f32 %v1227, %v1278
        %v1321 = vadd.f32 %v1228, %v1298
        %v1322 = vadd.f32 %v1229, %v1318
        %s1323 = scalar_lea.vmem %s5, 64
        %v1324 = vld [vmem:[%s1323] sm:$0xff]
        %1325 = vst [vmem:[#allocation1] ss:$2 sm:$0xff] %v596
        %s1326 = scalar_lea.vmem [#allocation1], 16
        %1327 = vst [vmem:[%s1326] ss:$2 sm:$0xff] %v597
        %v1328 = vld.sshfl [vmem:[#allocation1] sm:$0xff pattern:$0x75316420]
        %v1329 = vld.sshfl [vmem:[#allocation1 + $0x8] sm:$0xff pattern:$0x75316420]
        %v1330 = vld.sshfl [vmem:[#allocation1 + $0x10] sm:$0xff pattern:$0x75316420]
        %v1331 = vld.sshfl [vmem:[#allocation1 + $0x18] sm:$0xff pattern:$0x75316420]
        %1332 = vrot.lane.b32.xlu0 %v1328, 86
        %v1333 = vpop.permute.xlu0 %1332
        %1334 = vrot.lane.b32.xlu0 %v1329, 86
        %v1335 = vpop.permute.xlu0 %1334
        %1336 = vrot.lane.b32.xlu0 %v1330, 86
        %v1337 = vpop.permute.xlu0 %1336
        %1338 = vrot.lane.b32.xlu0 %v1331, 86
        %v1339 = vpop.permute.xlu0 %1338
        %vm1340 = vcmask 703488
        %v1341 = vsel %vm1340, %v1333, %v1335
        %v1342 = vsel %vm1340, %v1335, %v1337
        %v1343 = vsel %vm1340, %v1337, %v1339
        %v1345 = vsel %vm621, %v1324, 0
        %v1347 = vsel %vm501, %v1341, 0
        %v1349 = vsel %vm501, %v1342, 0
        %v1351 = vsel %vm501, %v1343, 0
        %1353 = vmatpush.msra.mxu0 0.0
        %1354 = vmatpush.msra.mxu0 0.0
        %1355 = vmatpush.msra.mxu0 0.0
        %1356 = vmatpush.msra.mxu0 0.0
        %1357 = vmatpush.msra.mxu0 0.0
        %1358 = vmatpush.msra.mxu0 0.0
        %1359 = vmatpush.msra.mxu0 0.0
        %1360 = vmatpush.msra.mxu0 0.0
        %1361 = vmatpush.msra.mxu0 0.0
        %1362 = vmatpush.msra.mxu0 0.0
        %1363 = vmatpush.msra.mxu0 0.0
        %1364 = vmatpush.msra.mxu0 0.0
        %1365 = vmatpush.msra.mxu0 0.0
        %1366 = vmatpush.msra.mxu0 0.0
        %1367 = vmatpush.msra.mxu0 0.0
        %1368 = vmatpush.msra.mxu0 %v1347
        %1369 = vmatmul.f32.gmra.mxu0 %v1345
        %v1370 = vpop.f32.mrf.mxu0
        %v1371 = vadd.f32 0.0, %v1370
        %1372 = vdwg.mxu0
        %1373 = vmatpush.msra.mxu0 0.0
        %1374 = vmatpush.msra.mxu0 0.0
        %1375 = vmatpush.msra.mxu0 0.0
        %1376 = vmatpush.msra.mxu0 0.0
        %1377 = vmatpush.msra.mxu0 0.0
        %1378 = vmatpush.msra.mxu0 0.0
        %1379 = vmatpush.msra.mxu0 0.0
        %1380 = vmatpush.msra.mxu0 0.0
        %1381 = vmatpush.msra.mxu0 0.0
        %1382 = vmatpush.msra.mxu0 0.0
        %1383 = vmatpush.msra.mxu0 0.0
        %1384 = vmatpush.msra.mxu0 0.0
        %1385 = vmatpush.msra.mxu0 0.0
        %1386 = vmatpush.msra.mxu0 0.0
        %1387 = vmatpush.msra.mxu0 0.0
        %1388 = vmatpush.msra.mxu0 %v1349
        %1389 = vmatmul.f32.gmra.mxu0 %v1345
        %v1390 = vpop.f32.mrf.mxu0
        %v1391 = vadd.f32 0.0, %v1390
        %1392 = vdwg.mxu0
        %1393 = vmatpush.msra.mxu0 0.0
        %1394 = vmatpush.msra.mxu0 0.0
        %1395 = vmatpush.msra.mxu0 0.0
        %1396 = vmatpush.msra.mxu0 0.0
        %1397 = vmatpush.msra.mxu0 0.0
        %1398 = vmatpush.msra.mxu0 0.0
        %1399 = vmatpush.msra.mxu0 0.0
        %1400 = vmatpush.msra.mxu0 0.0
        %1401 = vmatpush.msra.mxu0 0.0
        %1402 = vmatpush.msra.mxu0 0.0
        %1403 = vmatpush.msra.mxu0 0.0
        %1404 = vmatpush.msra.mxu0 0.0
        %1405 = vmatpush.msra.mxu0 0.0
        %1406 = vmatpush.msra.mxu0 0.0
        %1407 = vmatpush.msra.mxu0 0.0
        %1408 = vmatpush.msra.mxu0 %v1351
        %1409 = vmatmul.f32.gmra.mxu0 %v1345
        %v1410 = vpop.f32.mrf.mxu0
        %v1411 = vadd.f32 0.0, %v1410
        %1412 = vdwg.mxu0
        %v1413 = vadd.f32 %v1320, %v1371
        %v1414 = vadd.f32 %v1321, %v1391
        %v1415 = vadd.f32 %v1322, %v1411
        %v1416 = vld [vmem:[%s463] sm:$0x7]
        %v1418 = vperm.slane %v1416, 0
        %v1419 = vperm.slane %v1416, 1
        %v1420 = vperm.slane %v1416, 2
        %v1424 = vmul.f32 %v1413, %v1418
        %v1425 = vmul.f32 %v1414, %v1419
        %v1426 = vmul.f32 %v1415, %v1420
        %1427 = vst [vmem:[%s412] sm:$0xff] %v1424
        %1428 = vst [vmem:[%s412 + $0x8] sm:$0xff] %v1425
        %1429 = vst [vmem:[%s412 + $0x10] sm:$0xff] %v1426
        %v1430 = vadd.f32 %v1424, %v1425
        %v1431 = vadd.f32 %v1430, %v1426
        %1432 = vadd.xlane.f32.xlu0 %v1431
        %v1433 = vpop.xlane.xlu0 %1432
        %vm1434 = vcmask 7168
        %1435 = vst.msk [vmem:[%s472] sm:$0xff] %vm1434, %v1433
        %v1436 = vmul.f32 %v1424, %v1424
        %v1437 = vmul.f32 %v1425, %v1425
        %v1438 = vmul.f32 %v1426, %v1426
        %v1439 = vadd.f32 %v1436, %v1437
        %v1440 = vadd.f32 %v1439, %v1438
        %1441 = vadd.xlane.f32.xlu0 %v1440
        %v1442 = vpop.xlane.xlu0 %1441
        %1443 = vst.msk [vmem:[%s479] sm:$0xff] %vm1434, %v1442
        %s1444 = sand.u32 %s205, 1
        %s1445 = scalar_lea.sflag [#allocation6], %s1444
        %s1446 = sand.u32 %s205, 1
        %s1447 = smul.addr %s1446, 24
        %s1448 = scalar_lea.vmem [#allocation7], %s1447
        %p1449 = scmp.lt.s32.totalorder %s28, 1
        %s1450 = scalar_select %p1449, %s28, 1
        %p1451 = scmp.lt.s32.totalorder %s29, 0
        %s1452 = scalar_select %p1451, %s29, 0
        %s1453 = sadd.s32 %s1452, %s1450
        %s1454 = smul.addr %s1453, 8
        %s1455 = scalar_lea.vmem %s7, %s1454
        %p1456 = scmp.lt.s32.totalorder %s28, 1
        %s1457 = scalar_select %p1456, %s28, 1
        %p1458 = scmp.lt.s32.totalorder %s29, 0
        %s1459 = scalar_select %p1458, %s29, 0
        %s1460 = sadd.s32 %s1459, %s1457
        %s1461 = smul.addr %s1460, 8
        %s1462 = scalar_lea.vmem %s8, %s1461
        // Predicated region
        $region49: #{tpu_custom_call.1} parent=43 // pred_check
          %p1463 = pneg %p215
        $region50: #{tpu_custom_call.1} parent=43 // pred_check_branch
          %1465 = sbr.rel (%p1463) target = $region52
        $region51: #{tpu_custom_call.1} parent=43 // pred_region
          %s1466 = smul.u32 3, %s29
          %1468 = vsyncadd %s1445, 0
          %s1469 = smul.addr %s28, 3
          %s1470 = sadd.s32 %s1466, %s1469
          %s1471 = smul.addr %s1470, 8
          %s1472 = scalar_lea.hbm %s6, %s1471
          %s1474 = sshll.u32 %s1448, 4
          %s1475 = int_to_ptr.vmem [resolvable:$true] %s1474
          %s1476 = sshll.u32 %s1472, 4
          %s1477 = int_to_ptr.hbm [resolvable:$true] %s1476
          %1479 = dma.vmem_to_hbm [thread:$0]  %s1475, 384, %s1477, %s1445
        $region52: #{tpu_custom_call.1} parent=43 // pred_fallthru
          _
        // Predicated region
        $region53: #{tpu_custom_call.1} parent=43 // pred_check
          %p1480 = pneg %p243
        $region54: #{tpu_custom_call.1} parent=43 // pred_check_branch
          %1482 = sbr.rel (%p1480) target = $region56
        $region55: #{tpu_custom_call.1} parent=43 // pred_region
          _
        $region56: #{tpu_custom_call.1} parent=43 // pred_fallthru
          _
        // Predicated region
        $region57: #{tpu_custom_call.1} parent=43 // pred_check
          %p1483 = pneg %p271
        $region58: #{tpu_custom_call.1} parent=43 // pred_check_branch
          %1485 = sbr.rel (%p1483) target = $region60
        $region59: #{tpu_custom_call.1} parent=43 // pred_region
          _
        $region60: #{tpu_custom_call.1} parent=43 // pred_fallthru
          _
      $region44: #{tpu_custom_call.1} parent=5 // pred_fallthru
        _
      %p1486 = scmp.le.s32.totalorder 2, %s19
      // Predicated region
      $region61: #{tpu_custom_call.1} parent=5 // pred_check
        %p1487 = pneg %p1486
      $region62: #{tpu_custom_call.1} parent=5 // pred_check_branch
        %1489 = sbr.rel (%p1487) target = $region64
      $region63: #{tpu_custom_call.1} parent=5 // pred_region
        %s1490 = ssub.s32 %s19, 2
        // Predicated region
        $region65: #{tpu_custom_call.1} parent=63 // pred_check
          %p1491 = pneg %p221
        $region66: #{tpu_custom_call.1} parent=63 // pred_check_branch
          %1493 = sbr.rel (%p1491) target = $region68
        $region67: #{tpu_custom_call.1} parent=63 // pred_region
          %s1494 = sand.u32 %s206, 1
          %s1495 = scalar_lea.sflag [#allocation6], %s1494
          %s1496 = sand.u32 %s206, 1
          %s1497 = smul.addr %s1496, 24
          %s1498 = scalar_lea.vmem [#allocation7], %s1497
          %1500 = dma.done %s1495, 384
        $region68: #{tpu_custom_call.1} parent=63 // pred_fallthru
          _
        // Predicated region
        $region69: #{tpu_custom_call.1} parent=63 // pred_check
          %p1501 = pneg %p249
        $region70: #{tpu_custom_call.1} parent=63 // pred_check_branch
          %1503 = sbr.rel (%p1501) target = $region72
        $region71: #{tpu_custom_call.1} parent=63 // pred_region
          %p1504 = scmp.lt.s32.totalorder %s30, 1
          %s1505 = scalar_select %p1504, %s30, 1
          %p1506 = scmp.lt.s32.totalorder %s31, 0
          %s1507 = scalar_select %p1506, %s31, 0
          %s1508 = sadd.s32 %s1507, %s1505
          %s1509 = smul.addr %s1508, 8
          %s1510 = scalar_lea.vmem %s7, %s1509
        $region72: #{tpu_custom_call.1} parent=63 // pred_fallthru
          _
        // Predicated region
        $region73: #{tpu_custom_call.1} parent=63 // pred_check
          %p1511 = pneg %p277
        $region74: #{tpu_custom_call.1} parent=63 // pred_check_branch
          %1513 = sbr.rel (%p1511) target = $region76
        $region75: #{tpu_custom_call.1} parent=63 // pred_region
          %p1514 = scmp.lt.s32.totalorder %s30, 1
          %s1515 = scalar_select %p1514, %s30, 1
          %p1516 = scmp.lt.s32.totalorder %s31, 0
          %s1517 = scalar_select %p1516, %s31, 0
          %s1518 = sadd.s32 %s1517, %s1515
          %s1519 = smul.addr %s1518, 8
          %s1520 = scalar_lea.vmem %s8, %s1519
        $region76: #{tpu_custom_call.1} parent=63 // pred_fallthru
          _
      $region64: #{tpu_custom_call.1} parent=5 // pred_fallthru
        _
    $region6: #{tpu_custom_call.1} parent=1 // loop_footer
      %s23 = sadd.s32 1, %s19
    $region7: #{tpu_custom_call.1} parent=1 // loop_footer_branch
      %18 = sbr.rel target = $region3
    $region8: #{tpu_custom_call.1} parent=1 // loop_exit
      _
    %1521 = vsyncpa [#allocation5], 1
    %s1522 = scalar_lea.sflag [#allocation5], 1
    %1523 = vsyncpa %s1522, 1
    %1524 = vsyncpa [#allocation6], 1
    %s1525 = scalar_lea.sflag [#allocation6], 1
    %1526 = vsyncpa %s1525, 1

</llo_original>
